<compile_context>
chip_gen: v7x
topology: tpu7x:2x2x1
jax: 0.10.0
libtpu: 0.0.40
codegen_flags: <defaults>
</compile_context>

<pallas_src>
import functools

import jax
import jax.numpy as jnp
from jax import lax
from jax.experimental import pallas as pl
from jax.experimental.pallas import tpu as pltpu


# ---------------------------------------------------------------------------
# Kernel
# ---------------------------------------------------------------------------
def _flash_attend_kernel(q_ref, k_ref, v_ref, o_ref,
                         qs_sc, m_sc, l_sc, acc_sc, *,
                         scale, compute_dtype, exp_dtype, k_tile, k_valid):
    """One (head-group, q-tile) block; iterates over k-tiles on grid axis 2."""
    kv = pl.program_id(2)

    @pl.when(kv == 0)
    def _():
        # Scale folded into q once per q-tile (f32 multiply, then compute
        # dtype) instead of once per k-tile.
        qs_sc[...] = (q_ref[...].astype(jnp.float32) * scale).astype(compute_dtype)
        m_sc[...] = jnp.full_like(m_sc, -jnp.inf)
        l_sc[...] = jnp.zeros_like(l_sc)
        acc_sc[...] = jnp.zeros_like(acc_sc)

    q = qs_sc[...]                                   # (g, tq, d) compute dtype
    k = k_ref[...].astype(compute_dtype)             # (g, tk, d)
    v = v_ref[...].astype(compute_dtype)             # (g, tk, d)

    # sim[g, i, j] = <q[g, i, :], k[g, j, :]>, f32 accumulation on the MXU.
    sim = lax.dot_general(
        q, k,
        dimension_numbers=(((2,), (2,)), ((0,), (0,))),
        preferred_element_type=jnp.float32)          # (g, tq, tk) f32

    if k_valid is not None:
        # Mask padded key columns (static branch: only emitted when padding
        # was added in the wrapper).
        col = kv * k_tile + lax.broadcasted_iota(jnp.int32, sim.shape, 2)
        sim = jnp.where(col < k_valid, sim, -jnp.inf)

    # Online (streaming) softmax update; statistics stay f32.
    m_prev = m_sc[...]                               # (g, tq, 1)
    m_new = jnp.maximum(m_prev, jnp.max(sim, axis=-1, keepdims=True))
    alpha = jnp.exp(m_prev - m_new)
    # bf16 exponentials on EUPs that support them (v6e/v7x, d<=64); f32 else.
    p = jnp.exp((sim - m_new).astype(exp_dtype))     # (g, tq, tk)

    l_sc[...] = alpha * l_sc[...] + jnp.sum(p.astype(jnp.float32),
                                            axis=-1, keepdims=True)
    acc_sc[...] = alpha * acc_sc[...] + lax.dot_general(
        p.astype(compute_dtype), v,
        dimension_numbers=(((2,), (1,)), ((0,), (0,))),
        preferred_element_type=jnp.float32)          # (g, tq, d)
    m_sc[...] = m_new

    # TODO(synk): attn_dropout (nn.Dropout) is identity in eval mode; training
    # dropout on the attention matrix is not applied here.

    @pl.when(kv == pl.num_programs(2) - 1)
    def _():
        inv_l = pl.reciprocal(l_sc[...], approx=True)
        o_ref[...] = (acc_sc[...] * inv_l).astype(o_ref.dtype)


# ---------------------------------------------------------------------------
# Sizing helpers (generation-aware)
# ---------------------------------------------------------------------------
def _round_up(n, m):
    return ((n + m - 1) // m) * m


def _tpu_generation():
    """Best-effort TPU generation from the device kind (default 6)."""
    try:
        kind = jax.devices()[0].device_kind.lower()
    except Exception:
        return 6
    for g in (7, 6, 5, 4, 3, 2):
        if f"v{g}" in kind:
            return g
    return 6


def _vmem_capacity_bytes(gen):
    try:
        info = pltpu.get_tpu_info()
        cap = getattr(info, "vmem_capacity_bytes", None)
        if cap:
            return int(cap)
    except Exception:
        pass
    # v7x: 64 MiB per TensorCore; v5e/v6e: 128 MiB.
    return (64 if gen >= 7 else 128) * 1024 * 1024


def _padded_length(n):
    """Pad sequence lengths so tiling never falls back to a huge full-extent
    block: multiple of 8 for short sequences, multiple of 128 otherwise."""
    return _round_up(n, 8) if n <= 256 else _round_up(n, 128)


def _pick_tile(n, candidates):
    """Largest candidate tile that divides n (n is a multiple of 8)."""
    for c in candidates:
        if c <= n and n % c == 0:
            return c
    return n


def _pick_group(bh, tq, tk, d, num_q_tiles, *, in_itemsize, compute_itemsize,
                budget_bytes, min_parallel=1):
    """Number of (batch*head) slices per grid step under an accurate VMEM
    model; keeps at least `min_parallel` programs on the parallel axes."""
    d_pad = _round_up(max(d, 1), 128)      # lane padding of the head dim
    tq_p = _round_up(tq, 8)
    tk_p = _round_up(tk, 8)
    per_slice = (
        2 * (2 * tq_p + 2 * tk_p) * d_pad * in_itemsize   # q,o,k,v double-buffered I/O
        + 4 * tq_p * d_pad                                # f32 acc scratch
        + 2 * 4 * tq_p * 128                              # f32 m,l scratch (lane-padded)
        + compute_itemsize * tq_p * d_pad                 # scaled-q staging scratch
        + 12 * tq_p * tk_p                                # f32 sim/p live values (spill)
    )
    g = max(1, min(bh, budget_bytes // max(per_slice, 1)))
    while bh % g:                                          # divisor of bh
        g -= 1
    # v7x: keep the parallel grid extent >= number of TensorCores.
    while g > 1 and (bh // g) * num_q_tiles < min_parallel:
        g -= 1
        while bh % g:
            g -= 1
    return g


# ---------------------------------------------------------------------------
# Wrapper
# ---------------------------------------------------------------------------
def attend(q, k, v, *, scale=None, dropout=0.0, compute_dtype=None):
    """Pallas equivalent of Attend.forward (flash=False, eval mode)."""
    b, h, q_len, d = q.shape
    k_len = k.shape[-2]
    assert k.shape == (b, h, k_len, d) and v.shape == (b, h, k_len, d)

    if scale is None:
        scale = float(d) ** (-0.5)

    gen = _tpu_generation()
    vmem_cap = _vmem_capacity_bytes(gen)
    budget_bytes = int(0.40 * vmem_cap)          # resident working set
    vmem_limit = int(0.75 * vmem_cap)            # scoped VMEM limit

    in_dtype = jnp.dtype(q.dtype)
    if compute_dtype is None:
        # bf16 MXU path for f32/bf16 callers (f32 matmul is slow on v5e/v6e
        # and unsupported on v7x's MXU); accumulation stays f32.
        if in_dtype in (jnp.dtype(jnp.float32), jnp.dtype(jnp.bfloat16)):
            compute_dtype = jnp.bfloat16
        else:
            compute_dtype = in_dtype
    compute_dtype = jnp.dtype(compute_dtype)
    exp_dtype = (jnp.bfloat16
                 if (gen >= 6 and d <= 64
                     and compute_dtype == jnp.dtype(jnp.bfloat16))
                 else jnp.float32)

    bh = b * h
    q_pad = _padded_length(q_len)
    k_pad = _padded_length(k_len)

    qf = q.reshape(bh, q_len, d)
    kf = k.reshape(bh, k_len, d)
    vf = v.reshape(bh, k_len, d)
    if q_pad != q_len:
        qf = jnp.pad(qf, ((0, 0), (0, q_pad - q_len), (0, 0)))
    if k_pad != k_len:
        kf = jnp.pad(kf, ((0, 0), (0, k_pad - k_len), (0, 0)))
        vf = jnp.pad(vf, ((0, 0), (0, k_pad - k_len), (0, 0)))

    # Tile candidates matched to the MXU generation (128-wide on v5e,
    # 256-wide on v6e/v7x); prefer tk=256 when d<=64 to halve score spill.
    if gen >= 6:
        tq_cands = (256, 128, 64, 32, 16, 8)
        tk_cands = ((256, 512, 128, 64, 32, 16, 8) if d <= 64
                    else (512, 256, 128, 64, 32, 16, 8))
    else:
        tq_cands = (128, 64, 32, 16, 8)
        tk_cands = (256, 128, 64, 32, 16, 8)
    tq = _pick_tile(q_pad, tq_cands)
    tk = _pick_tile(k_pad, tk_cands)

    num_q_tiles = q_pad // tq
    g = _pick_group(bh, tq, tk, d, num_q_tiles,
                    in_itemsize=in_dtype.itemsize,
                    compute_itemsize=compute_dtype.itemsize,
                    budget_bytes=budget_bytes,
                    min_parallel=2 if gen >= 7 else 1)

    grid = (bh // g, num_q_tiles, k_pad // tk)

    kernel = functools.partial(
        _flash_attend_kernel,
        scale=float(scale),
        compute_dtype=compute_dtype,
        exp_dtype=exp_dtype,
        k_tile=tk,
        k_valid=(k_len if k_pad != k_len else None))

    # TODO(synk): on v5e, if xprof shows exposed K/V DMA at large tk, add
    # pipeline_mode=pl.Buffered(3) to the K/V BlockSpecs.
    # TODO(synk): for d < 128, folding the head-group into the lane dim of the
    # accumulator/output (lane-dense stores) is a further win not done here;
    # we compensate by keeping g (head batching) as high as the VMEM budget allows.
    out_flat = pl.pallas_call(
        kernel,
        out_shape=jax.ShapeDtypeStruct((bh, q_pad, d), q.dtype),
        grid_spec=pltpu.PrefetchScalarGridSpec(
            num_scalar_prefetch=0,
            grid=grid,
            in_specs=[
                pl.BlockSpec((g, tq, d), lambda gi, qi, ki: (gi, qi, 0)),
                pl.BlockSpec((g, tk, d), lambda gi, qi, ki: (gi, ki, 0)),
                pl.BlockSpec((g, tk, d), lambda gi, qi, ki: (gi, ki, 0)),
            ],
            out_specs=pl.BlockSpec((g, tq, d), lambda gi, qi, ki: (gi, qi, 0)),
            scratch_shapes=[
                pltpu.VMEM((g, tq, d), compute_dtype),   # staged q * scale
                pltpu.VMEM((g, tq, 1), jnp.float32),     # running max m
                pltpu.VMEM((g, tq, 1), jnp.float32),     # running denom l
                pltpu.VMEM((g, tq, d), jnp.float32),     # output accumulator
            ],
        ),
        compiler_params=pltpu.CompilerParams(
            dimension_semantics=("parallel", "parallel", "arbitrary"),
            vmem_limit_bytes=vmem_limit),
    )(qf, kf, vf)

    if q_pad != q_len:
        out_flat = out_flat[:, :q_len, :]
    return out_flat.reshape(b, h, q_len, d)


def attend_reference(q, k, v, *, scale=None):
    """Pure-JAX reference mirroring the PyTorch forward exactly."""
    if scale is None:
        scale = q.shape[-1] ** (-0.5)
    sim = jnp.einsum("bhid,bhjd->bhij", q, k) * scale
    attn = jax.nn.softmax(sim, axis=-1)
    return jnp.einsum("bhij,bhjd->bhid", attn, v)


if __name__ == "__main__":
    key = jax.random.PRNGKey(0)

    # Case 1: small shapes implied by the module's usage.
    kq, kk, kv = jax.random.split(key, 3)
    b, h, n, d = 2, 4, 8, 32  # batch, heads, seq, head dim
    q = jax.random.normal(kq, (b, h, n, d), dtype=jnp.float32)
    k = jax.random.normal(kk, (b, h, n, d), dtype=jnp.float32)
    v = jax.random.normal(kv, (b, h, n, d), dtype=jnp.float32)

    out = jax.block_until_ready(attend(q, k, v))
    ref = attend_reference(q, k, v)
    assert out.shape == (b, h, n, d)
    assert jnp.allclose(out, ref, atol=1e-2, rtol=1e-2), "mismatch (case 1)"

    # Case 2: larger k_len to exercise multi-step online softmax along the
    # k-tile grid axis (cross-attention-like shape).
    kq2, kk2, kv2 = jax.random.split(jax.random.PRNGKey(0), 3)
    b2, h2, nq2, nk2, d2 = 1, 2, 128, 1024, 64
    q2 = jax.random.normal(kq2, (b2, h2, nq2, d2), dtype=jnp.float32)
    k2 = jax.random.normal(kk2, (b2, h2, nk2, d2), dtype=jnp.float32)
    v2 = jax.random.normal(kv2, (b2, h2, nk2, d2), dtype=jnp.float32)

    out2 = jax.block_until_ready(attend(q2, k2, v2))
    ref2 = attend_reference(q2, k2, v2)
    assert out2.shape == (b2, h2, nq2, d2)
    assert jnp.allclose(out2, ref2, atol=1e-2, rtol=1e-2), "mismatch (case 2)"

    # Case 3: awkward (non-multiple-of-8) lengths exercise the padding + key
    # masking path.
    kq3, kk3, kv3 = jax.random.split(jax.random.PRNGKey(1), 3)
    b3, h3, nq3, nk3, d3 = 1, 2, 13, 37, 32
    q3 = jax.random.normal(kq3, (b3, h3, nq3, d3), dtype=jnp.float32)
    k3 = jax.random.normal(kk3, (b3, h3, nk3, d3), dtype=jnp.float32)
    v3 = jax.random.normal(kv3, (b3, h3, nk3, d3), dtype=jnp.float32)

    out3 = jax.block_until_ready(attend(q3, k3, v3))
    ref3 = attend_reference(q3, k3, v3)
    assert out3.shape == (b3, h3, nq3, d3)
    assert jnp.allclose(out3, ref3, atol=1e-2, rtol=1e-2), "mismatch (case 3)"

    print("KERNEL_OK")
</pallas_src>

<mosaic_0001>
module attributes {stable_mosaic.version = 11 : i64} {
  func.func @_flash_attend_kernel(%arg0: i32, %arg1: i32, %arg2: i32, %arg3: memref<8x8x32xf32, #tpu.memory_space<vmem>>, %arg4: memref<8x8x32xf32, #tpu.memory_space<vmem>>, %arg5: memref<8x8x32xf32, #tpu.memory_space<vmem>>, %arg6: memref<8x8x32xf32, #tpu.memory_space<vmem>>, %arg7: memref<8x8x32xbf16, #tpu.memory_space<vmem>>, %arg8: memref<8x8x1xf32, #tpu.memory_space<vmem>>, %arg9: memref<8x8x1xf32, #tpu.memory_space<vmem>>, %arg10: memref<8x8x32xf32, #tpu.memory_space<vmem>>) attributes {dimension_semantics = [#tpu.dimension_semantics<parallel>, #tpu.dimension_semantics<parallel>, #tpu.dimension_semantics<arbitrary>], iteration_bounds = array<i64: 1, 1, 1>, scalar_prefetch = 0 : i64, scratch_operands = 4 : i64, tpu.core_type = #tpu.core_type<tc>, window_params = [{transform_indices = @transform_0, window_bounds = array<i64: 8, 8, 32>}, {transform_indices = @transform_1, window_bounds = array<i64: 8, 8, 32>}, {transform_indices = @transform_2, window_bounds = array<i64: 8, 8, 32>}, {transform_indices = @transform_3, window_bounds = array<i64: 8, 8, 32>}]} {
    %c0_i32 = arith.constant 0 : i32
    %0 = arith.cmpi eq, %arg2, %c0_i32 : i32
    %1 = arith.extui %0 : i1 to i32
    %c0_i32_0 = arith.constant 0 : i32
    %2 = arith.cmpi ne, %1, %c0_i32_0 : i32
    scf.if %2 {
      %c0_32 = arith.constant 0 : index
      %c0_33 = arith.constant 0 : index
      %c0_34 = arith.constant 0 : index
      %36 = vector.load %arg3[%c0_32, %c0_33, %c0_34] : memref<8x8x32xf32, #tpu.memory_space<vmem>>, vector<8x8x32xf32>
      %cst_35 = arith.constant 0.176776692 : f32
      %37 = vector.broadcast %cst_35 : f32 to vector<8x8x32xf32>
      %38 = arith.mulf %36, %37 : vector<8x8x32xf32>
      %39 = arith.truncf %38 : vector<8x8x32xf32> to vector<8x8x32xbf16>
      %c0_36 = arith.constant 0 : index
      %c0_37 = arith.constant 0 : index
      %c0_38 = arith.constant 0 : index
      %40 = vector.load %arg7[%c0_36, %c0_37, %c0_38] : memref<8x8x32xbf16, #tpu.memory_space<vmem>>, vector<8x8x32xbf16>
      tpu.vector_store %arg7[%c0_36, %c0_37, %c0_38], %39 {strides = array<i32>} : memref<8x8x32xbf16, #tpu.memory_space<vmem>>, vector<8x8x32xbf16>,
      %cst_39 = arith.constant 0xFF800000 : f32
      %41 = vector.broadcast %cst_39 : f32 to vector<8x8x1xf32>
      %c0_40 = arith.constant 0 : index
      %c0_41 = arith.constant 0 : index
      %c0_42 = arith.constant 0 : index
      %42 = vector.load %arg8[%c0_40, %c0_41, %c0_42] : memref<8x8x1xf32, #tpu.memory_space<vmem>>, vector<8x8x1xf32>
      tpu.vector_store %arg8[%c0_40, %c0_41, %c0_42], %41 {strides = array<i32>} : memref<8x8x1xf32, #tpu.memory_space<vmem>>, vector<8x8x1xf32>,
      %cst_43 = arith.constant 0.000000e+00 : f32
      %43 = vector.broadcast %cst_43 : f32 to vector<8x8x1xf32>
      %c0_44 = arith.constant 0 : index
      %c0_45 = arith.constant 0 : index
      %c0_46 = arith.constant 0 : index
      %44 = vector.load %arg9[%c0_44, %c0_45, %c0_46] : memref<8x8x1xf32, #tpu.memory_space<vmem>>, vector<8x8x1xf32>
      tpu.vector_store %arg9[%c0_44, %c0_45, %c0_46], %43 {strides = array<i32>} : memref<8x8x1xf32, #tpu.memory_space<vmem>>, vector<8x8x1xf32>,
      %cst_47 = arith.constant 0.000000e+00 : f32
      %45 = vector.broadcast %cst_47 : f32 to vector<8x8x32xf32>
      %c0_48 = arith.constant 0 : index
      %c0_49 = arith.constant 0 : index
      %c0_50 = arith.constant 0 : index
      %46 = vector.load %arg10[%c0_48, %c0_49, %c0_50] : memref<8x8x32xf32, #tpu.memory_space<vmem>>, vector<8x8x32xf32>
      tpu.vector_store %arg10[%c0_48, %c0_49, %c0_50], %45 {strides = array<i32>} : memref<8x8x32xf32, #tpu.memory_space<vmem>>, vector<8x8x32xf32>,
    } else {
    }
    %c0 = arith.constant 0 : index
    %c0_1 = arith.constant 0 : index
    %c0_2 = arith.constant 0 : index
    %3 = vector.load %arg7[%c0, %c0_1, %c0_2] : memref<8x8x32xbf16, #tpu.memory_space<vmem>>, vector<8x8x32xbf16>
    %c0_3 = arith.constant 0 : index
    %c0_4 = arith.constant 0 : index
    %c0_5 = arith.constant 0 : index
    %4 = vector.load %arg4[%c0_3, %c0_4, %c0_5] : memref<8x8x32xf32, #tpu.memory_space<vmem>>, vector<8x8x32xf32>
    %5 = arith.truncf %4 : vector<8x8x32xf32> to vector<8x8x32xbf16>
    %c0_6 = arith.constant 0 : index
    %c0_7 = arith.constant 0 : index
    %c0_8 = arith.constant 0 : index
    %6 = vector.load %arg5[%c0_6, %c0_7, %c0_8] : memref<8x8x32xf32, #tpu.memory_space<vmem>>, vector<8x8x32xf32>
    %7 = arith.truncf %6 : vector<8x8x32xf32> to vector<8x8x32xbf16>
    %cst = arith.constant dense<0.000000e+00> : vector<8x8x8xf32>
    %8 = tpu.matmul %3, %5, %cst {dimension_numbers = #tpu.dot_dimension_numbers<[2], [2], [1], [1], [0, 0, 0, 1, 1, 1], [0], [0]>} : vector<8x8x32xbf16>, vector<8x8x32xbf16>, vector<8x8x8xf32> -> vector<8x8x8xf32>
    %c0_9 = arith.constant 0 : index
    %c0_10 = arith.constant 0 : index
    %c0_11 = arith.constant 0 : index
    %9 = vector.load %arg8[%c0_9, %c0_10, %c0_11] : memref<8x8x1xf32, #tpu.memory_space<vmem>>, vector<8x8x1xf32>
    %cst_12 = arith.constant dense<0xFF800000> : vector<8x8xf32>
    %10 = vector.multi_reduction <maximumf>, %8, %cst_12 [2] : vector<8x8x8xf32> to vector<8x8xf32>
    %11 = vector.shape_cast %10 : vector<8x8xf32> to vector<8x8x1xf32>
    %12 = arith.maximumf %9, %11 : vector<8x8x1xf32>
    %13 = arith.subf %9, %12 : vector<8x8x1xf32>
    %14 = math.exp %13 : vector<8x8x1xf32>
    %15 = vector.broadcast %12 : vector<8x8x1xf32> to vector<8x8x8xf32>
    %16 = arith.subf %8, %15 : vector<8x8x8xf32>
    %17 = arith.truncf %16 : vector<8x8x8xf32> to vector<8x8x8xbf16>
    %18 = math.exp %17 : vector<8x8x8xbf16>
    %c0_13 = arith.constant 0 : index
    %c0_14 = arith.constant 0 : index
    %c0_15 = arith.constant 0 : index
    %19 = vector.load %arg9[%c0_13, %c0_14, %c0_15] : memref<8x8x1xf32, #tpu.memory_space<vmem>>, vector<8x8x1xf32>
    %20 = arith.mulf %14, %19 : vector<8x8x1xf32>
    %21 = arith.extf %18 : vector<8x8x8xbf16> to vector<8x8x8xf32>
    %cst_16 = arith.constant dense<0.000000e+00> : vector<8x8xf32>
    %22 = vector.multi_reduction <add>, %21, %cst_16 [2] : vector<8x8x8xf32> to vector<8x8xf32>
    %23 = vector.shape_cast %22 : vector<8x8xf32> to vector<8x8x1xf32>
    %24 = arith.addf %20, %23 : vector<8x8x1xf32>
    %c0_17 = arith.constant 0 : index
    %c0_18 = arith.constant 0 : index
    %c0_19 = arith.constant 0 : index
    %25 = vector.load %arg9[%c0_17, %c0_18, %c0_19] : memref<8x8x1xf32, #tpu.memory_space<vmem>>, vector<8x8x1xf32>
    tpu.vector_store %arg9[%c0_17, %c0_18, %c0_19], %24 {strides = array<i32>} : memref<8x8x1xf32, #tpu.memory_space<vmem>>, vector<8x8x1xf32>,
    %c0_20 = arith.constant 0 : index
    %c0_21 = arith.constant 0 : index
    %c0_22 = arith.constant 0 : index
    %26 = vector.load %arg10[%c0_20, %c0_21, %c0_22] : memref<8x8x32xf32, #tpu.memory_space<vmem>>, vector<8x8x32xf32>
    %27 = vector.broadcast %14 : vector<8x8x1xf32> to vector<8x8x32xf32>
    %28 = arith.mulf %27, %26 : vector<8x8x32xf32>
    %cst_23 = arith.constant dense<0.000000e+00> : vector<8x8x32xf32>
    %29 = tpu.matmul %18, %7, %cst_23 {dimension_numbers = #tpu.dot_dimension_numbers<[2], [1], [1], [2], [0, 0, 0, 1, 1, 2], [0], [0]>} : vector<8x8x8xbf16>, vector<8x8x32xbf16>, vector<8x8x32xf32> -> vector<8x8x32xf32>
    %30 = arith.addf %28, %29 : vector<8x8x32xf32>
    %c0_24 = arith.constant 0 : index
    %c0_25 = arith.constant 0 : index
    %c0_26 = arith.constant 0 : index
    %31 = vector.load %arg10[%c0_24, %c0_25, %c0_26] : memref<8x8x32xf32, #tpu.memory_space<vmem>>, vector<8x8x32xf32>
    tpu.vector_store %arg10[%c0_24, %c0_25, %c0_26], %30 {strides = array<i32>} : memref<8x8x32xf32, #tpu.memory_space<vmem>>, vector<8x8x32xf32>,
    %c0_27 = arith.constant 0 : index
    %c0_28 = arith.constant 0 : index
    %c0_29 = arith.constant 0 : index
    %32 = vector.load %arg8[%c0_27, %c0_28, %c0_29] : memref<8x8x1xf32, #tpu.memory_space<vmem>>, vector<8x8x1xf32>
    tpu.vector_store %arg8[%c0_27, %c0_28, %c0_29], %12 {strides = array<i32>} : memref<8x8x1xf32, #tpu.memory_space<vmem>>, vector<8x8x1xf32>,
    %c0_i32_30 = arith.constant 0 : i32
    %33 = arith.cmpi eq, %arg2, %c0_i32_30 : i32
    %34 = arith.extui %33 : i1 to i32
    %c0_i32_31 = arith.constant 0 : i32
    %35 = arith.cmpi ne, %34, %c0_i32_31 : i32
    scf.if %35 {
      %c0_32 = arith.constant 0 : index
      %c0_33 = arith.constant 0 : index
      %c0_34 = arith.constant 0 : index
      %36 = vector.load %arg9[%c0_32, %c0_33, %c0_34] : memref<8x8x1xf32, #tpu.memory_space<vmem>>, vector<8x8x1xf32>
      %37 = tpu.reciprocal %36 {approx = true} : vector<8x8x1xf32> -> vector<8x8x1xf32>
      %c0_35 = arith.constant 0 : index
      %c0_36 = arith.constant 0 : index
      %c0_37 = arith.constant 0 : index
      %38 = vector.load %arg10[%c0_35, %c0_36, %c0_37] : memref<8x8x32xf32, #tpu.memory_space<vmem>>, vector<8x8x32xf32>
      %39 = vector.broadcast %37 : vector<8x8x1xf32> to vector<8x8x32xf32>
      %40 = arith.mulf %38, %39 : vector<8x8x32xf32>
      %c0_38 = arith.constant 0 : index
      %c0_39 = arith.constant 0 : index
      %c0_40 = arith.constant 0 : index
      %41 = vector.load %arg6[%c0_38, %c0_39, %c0_40] : memref<8x8x32xf32, #tpu.memory_space<vmem>>, vector<8x8x32xf32>
      tpu.vector_store %arg6[%c0_38, %c0_39, %c0_40], %40 {strides = array<i32>} : memref<8x8x32xf32, #tpu.memory_space<vmem>>, vector<8x8x32xf32>,
    } else {
    }
    return
  }
  func.func @transform_0(%arg0: i32, %arg1: i32, %arg2: i32) -> (i32, i32, i32) {
    %c0_i32 = arith.constant 0 : i32
    %c0_i32_0 = arith.constant 0 : i32
    return %arg0, %arg1, %c0_i32 : i32, i32, i32
  }
  func.func @transform_1(%arg0: i32, %arg1: i32, %arg2: i32) -> (i32, i32, i32) {
    %c0_i32 = arith.constant 0 : i32
    %c0_i32_0 = arith.constant 0 : i32
    return %arg0, %arg2, %c0_i32 : i32, i32, i32
  }
  func.func @transform_2(%arg0: i32, %arg1: i32, %arg2: i32) -> (i32, i32, i32) {
    %c0_i32 = arith.constant 0 : i32
    %c0_i32_0 = arith.constant 0 : i32
    return %arg0, %arg2, %c0_i32 : i32, i32, i32
  }
  func.func @transform_3(%arg0: i32, %arg1: i32, %arg2: i32) -> (i32, i32, i32) {
    %c0_i32 = arith.constant 0 : i32
    %c0_i32_0 = arith.constant 0 : i32
    return %arg0, %arg1, %c0_i32 : i32, i32, i32
  }
}

</mosaic_0001>

<llo_original>
// kernel: tpu_custom_call.1
$region0: #{tpu_custom_call.1}
  #allocation0 [shape = 'u32[]', space=smem, size = 0x4, offset = 0x4, fixed_abs, tag = 'smem constant byte address 0x4 - core index']
  #allocation1 [shape = 'u32[144,128]{1,0:T(1,128)}', space=vmem, size = 0x12000, scoped, tag = 'internal scratch']
  #allocation2 [shape = 'bf16[8,8,32]{2,1,0:T(8,128)(2,1)}', space=vmem, size = 0x4000, scoped, tag = 'scratch operand']
  #allocation3 [shape = 'f32[8,8,1]{2,1,0:T(8,128)}', space=vmem, size = 0x8000, scoped, tag = 'scratch operand']
  #allocation4 [shape = 'f32[8,8,1]{2,1,0:T(8,128)}', space=vmem, size = 0x8000, scoped, tag = 'scratch operand']
  #allocation5 [shape = 'f32[8,8,32]{2,1,0:T(8,128)}', space=vmem, size = 0x8000, scoped, tag = 'scratch operand']
  %s0 = inlined_call_operand.hbm [shape: f32[8,8,32], index: 0, kind: input, shape index: {}]
  %s1 = inlined_call_operand.hbm [shape: f32[8,8,32], index: 1, kind: input, shape index: {}]
  %s2 = inlined_call_operand.hbm [shape: f32[8,8,32], index: 2, kind: input, shape index: {}]
  %s3 = inlined_call_operand.hbm [shape: f32[8,8,32], index: 3, kind: output, shape index: {}]
  %s4 = sld [smem:[#allocation0]]
  $region42: #{tpu_custom_call.1} parent=0
    _
  %s6 = ssub.s32 1, %s4
  %s7 = scalar_select 0, %s6, %s4
  $region1: #{tpu_custom_call.1} parent=0
    #allocation6 [shape = 'u8[32768]{0}', space=vmem, size = 0x8000, scoped, tag = 'input window, operand 0, single buffered']
    #allocation7 [shape = 's32[1]{0}', space=sflag, size = 0x4, scoped, tag = 'scoped memory for tpu_custom_call.1']
    #allocation8 [shape = 's32[1]{0}', space=sflag, size = 0x4, scoped, tag = 'scoped memory for tpu_custom_call.1']
    #allocation9 [shape = 'u8[32768]{0}', space=vmem, size = 0x8000, scoped, tag = 'input window, operand 1, single buffered']
    #allocation10 [shape = 's32[1]{0}', space=sflag, size = 0x4, scoped, tag = 'scoped memory for tpu_custom_call.1']
    #allocation11 [shape = 'u8[32768]{0}', space=vmem, size = 0x8000, scoped, tag = 'input window, operand 2, single buffered']
    #allocation12 [shape = 'u8[32768]{0}', space=vmem, size = 0x8000, scoped, tag = 'output window, operand 0, single buffered']
    %8 = vsyncpa [#allocation7], 0
    %9 = vsyncpa [#allocation10], 0
    %10 = vsyncpa [#allocation8], 0
    // Predicated region
    $region2: #{tpu_custom_call.1} parent=1 // pred_check
      _
    $region3: #{tpu_custom_call.1} parent=1 // pred_check_branch
      %12 = sbr.rel (0) target = $region5
    $region4: #{tpu_custom_call.1} parent=1 // pred_region
      %s14 = ssub.s32 1024, 1024
      %15 = vsyncadd [#allocation7], %s14
      %s16 = sshll.u32 [#allocation6], 4
      %s17 = int_to_ptr.vmem [resolvable:$true] %s16
      %22 = dma.hbm_to_vmem [thread:$0]  %s0, 1024, %s17, [#allocation7], 128, 128, 8
    $region5: #{tpu_custom_call.1} parent=1 // pred_fallthru
      _
    // Predicated region
    $region6: #{tpu_custom_call.1} parent=1 // pred_check
      _
    $region7: #{tpu_custom_call.1} parent=1 // pred_check_branch
      %24 = sbr.rel (0) target = $region9
    $region8: #{tpu_custom_call.1} parent=1 // pred_region
      %s26 = ssub.s32 1024, 1024
      %27 = vsyncadd [#allocation10], %s26
      %s28 = sshll.u32 [#allocation9], 4
      %s29 = int_to_ptr.vmem [resolvable:$true] %s28
      %34 = dma.hbm_to_vmem [thread:$0]  %s1, 1024, %s29, [#allocation10], 128, 128, 8
    $region9: #{tpu_custom_call.1} parent=1 // pred_fallthru
      _
    // Predicated region
    $region10: #{tpu_custom_call.1} parent=1 // pred_check
      _
    $region11: #{tpu_custom_call.1} parent=1 // pred_check_branch
      %36 = sbr.rel (0) target = $region13
    $region12: #{tpu_custom_call.1} parent=1 // pred_region
      %s38 = ssub.s32 1024, 1024
      %39 = vsyncadd [#allocation10], %s38
      %s40 = sshll.u32 [#allocation11], 4
      %s41 = int_to_ptr.vmem [resolvable:$true] %s40
      %46 = dma.hbm_to_vmem [thread:$0]  %s2, 1024, %s41, [#allocation10], 128, 128, 8
    $region13: #{tpu_custom_call.1} parent=1 // pred_fallthru
      _
    // Predicated region
    $region14: #{tpu_custom_call.1} parent=1 // pred_check
      _
    $region15: #{tpu_custom_call.1} parent=1 // pred_check_branch
      %48 = sbr.rel (0) target = $region17
    $region16: #{tpu_custom_call.1} parent=1 // pred_region
      %49 = dma.done [#allocation7], 1024
    $region17: #{tpu_custom_call.1} parent=1 // pred_fallthru
      _
    // Predicated region
    $region18: #{tpu_custom_call.1} parent=1 // pred_check
      _
    $region19: #{tpu_custom_call.1} parent=1 // pred_check_branch
      %51 = sbr.rel (0) target = $region21
    $region20: #{tpu_custom_call.1} parent=1 // pred_region
      %52 = dma.done [#allocation10], 1024
    $region21: #{tpu_custom_call.1} parent=1 // pred_fallthru
      _
    // Predicated region
    $region22: #{tpu_custom_call.1} parent=1 // pred_check
      _
    $region23: #{tpu_custom_call.1} parent=1 // pred_check_branch
      %54 = sbr.rel (0) target = $region25
    $region24: #{tpu_custom_call.1} parent=1 // pred_region
      %55 = dma.done [#allocation10], 1024
    $region25: #{tpu_custom_call.1} parent=1 // pred_fallthru
      _
    %p57 = scmp.eq.s32.totalorder 0, 0
    // Predicated region
    $region26: #{tpu_custom_call.1} parent=1 // pred_check
      %p58 = pneg %p57
    $region27: #{tpu_custom_call.1} parent=1 // pred_check_branch
      %60 = sbr.rel (%p58) target = $region29
    $region28: #{tpu_custom_call.1} parent=1 // pred_region
      %v61 = vld [vmem:[#allocation6] sm:$0xff]
      %v62 = vld [vmem:[#allocation6 + $0x8] sm:$0xff]
      %v63 = vld [vmem:[#allocation6 + $0x10] sm:$0xff]
      %v64 = vld [vmem:[#allocation6 + $0x18] sm:$0xff]
      %v65 = vld [vmem:[#allocation6 + $0x20] sm:$0xff]
      %v66 = vld [vmem:[#allocation6 + $0x28] sm:$0xff]
      %v67 = vld [vmem:[#allocation6 + $0x30] sm:$0xff]
      %v68 = vld [vmem:[#allocation6 + $0x38] sm:$0xff]
      %v69 = vmul.f32 %v61, 0.17677669
      %v70 = vmul.f32 %v62, 0.17677669
      %v71 = vmul.f32 %v63, 0.17677669
      %v72 = vmul.f32 %v64, 0.17677669
      %v73 = vmul.f32 %v65, 0.17677669
      %v74 = vmul.f32 %v66, 0.17677669
      %v75 = vmul.f32 %v67, 0.17677669
      %v76 = vmul.f32 %v68, 0.17677669
      %v77 = vpack.c.bf16 %v69, %v69
      %v78 = vpack.c.bf16 %v70, %v70
      %v79 = vpack.c.bf16 %v71, %v71
      %v80 = vpack.c.bf16 %v72, %v72
      %v81 = vpack.c.bf16 %v73, %v73
      %v82 = vpack.c.bf16 %v74, %v74
      %v83 = vpack.c.bf16 %v75, %v75
      %v84 = vpack.c.bf16 %v76, %v76
      %vm85 = vcmask 257024
      %86 = vst.msk [vmem:[#allocation2] sm:$0xf] %vm85, %v77
      %87 = vst.msk [vmem:[#allocation2 + $0x4] sm:$0xf] %vm85, %v78
      %88 = vst.msk [vmem:[#allocation2 + $0x8] sm:$0xf] %vm85, %v79
      %89 = vst.msk [vmem:[#allocation2 + $0xc] sm:$0xf] %vm85, %v80
      %90 = vst.msk [vmem:[#allocation2 + $0x10] sm:$0xf] %vm85, %v81
      %91 = vst.msk [vmem:[#allocation2 + $0x14] sm:$0xf] %vm85, %v82
      %92 = vst.msk [vmem:[#allocation2 + $0x18] sm:$0xf] %vm85, %v83
      %93 = vst.msk [vmem:[#allocation2 + $0x1c] sm:$0xf] %vm85, %v84
      %vm94 = vcmask 7168
      %95 = vst.msk [vmem:[#allocation3] sm:$0xff] %vm94, -inf
      %96 = vst.msk [vmem:[#allocation3 + $0x8] sm:$0xff] %vm94, -inf
      %97 = vst.msk [vmem:[#allocation3 + $0x10] sm:$0xff] %vm94, -inf
      %98 = vst.msk [vmem:[#allocation3 + $0x18] sm:$0xff] %vm94, -inf
      %99 = vst.msk [vmem:[#allocation3 + $0x20] sm:$0xff] %vm94, -inf
      %100 = vst.msk [vmem:[#allocation3 + $0x28] sm:$0xff] %vm94, -inf
      %101 = vst.msk [vmem:[#allocation3 + $0x30] sm:$0xff] %vm94, -inf
      %102 = vst.msk [vmem:[#allocation3 + $0x38] sm:$0xff] %vm94, -inf
      %103 = vst.msk [vmem:[#allocation4] sm:$0xff] %vm94, 0.0
      %104 = vst.msk [vmem:[#allocation4 + $0x8] sm:$0xff] %vm94, 0.0
      %105 = vst.msk [vmem:[#allocation4 + $0x10] sm:$0xff] %vm94, 0.0
      %106 = vst.msk [vmem:[#allocation4 + $0x18] sm:$0xff] %vm94, 0.0
      %107 = vst.msk [vmem:[#allocation4 + $0x20] sm:$0xff] %vm94, 0.0
      %108 = vst.msk [vmem:[#allocation4 + $0x28] sm:$0xff] %vm94, 0.0
      %109 = vst.msk [vmem:[#allocation4 + $0x30] sm:$0xff] %vm94, 0.0
      %110 = vst.msk [vmem:[#allocation4 + $0x38] sm:$0xff] %vm94, 0.0
      %vm111 = vcmask 261120
      %112 = vst.msk [vmem:[#allocation5] sm:$0xff] %vm111, 0.0
      %113 = vst.msk [vmem:[#allocation5 + $0x8] sm:$0xff] %vm111, 0.0
      %114 = vst.msk [vmem:[#allocation5 + $0x10] sm:$0xff] %vm111, 0.0
      %115 = vst.msk [vmem:[#allocation5 + $0x18] sm:$0xff] %vm111, 0.0
      %116 = vst.msk [vmem:[#allocation5 + $0x20] sm:$0xff] %vm111, 0.0
      %117 = vst.msk [vmem:[#allocation5 + $0x28] sm:$0xff] %vm111, 0.0
      %118 = vst.msk [vmem:[#allocation5 + $0x30] sm:$0xff] %vm111, 0.0
      %119 = vst.msk [vmem:[#allocation5 + $0x38] sm:$0xff] %vm111, 0.0
    $region29: #{tpu_custom_call.1} parent=1 // pred_fallthru
      _
    %v120 = vld [vmem:[#allocation2] sm:$0xf]
    %v121 = vld [vmem:[#allocation2 + $0x4] sm:$0xf]
    %v122 = vld [vmem:[#allocation2 + $0x8] sm:$0xf]
    %v123 = vld [vmem:[#allocation2 + $0xc] sm:$0xf]
    %v124 = vld [vmem:[#allocation2 + $0x10] sm:$0xf]
    %v125 = vld [vmem:[#allocation2 + $0x14] sm:$0xf]
    %v126 = vld [vmem:[#allocation2 + $0x18] sm:$0xf]
    %v127 = vld [vmem:[#allocation2 + $0x1c] sm:$0xf]
    %v128 = vld [vmem:[#allocation9] sm:$0xff]
    %v129 = vld [vmem:[#allocation9 + $0x8] sm:$0xff]
    %v130 = vld [vmem:[#allocation9 + $0x10] sm:$0xff]
    %v131 = vld [vmem:[#allocation9 + $0x18] sm:$0xff]
    %v132 = vld [vmem:[#allocation9 + $0x20] sm:$0xff]
    %v133 = vld [vmem:[#allocation9 + $0x28] sm:$0xff]
    %v134 = vld [vmem:[#allocation9 + $0x30] sm:$0xff]
    %v135 = vld [vmem:[#allocation9 + $0x38] sm:$0xff]
    %v136 = vpack.c.bf16 %v128, %v128
    %v137 = vpack.c.bf16 %v129, %v129
    %v138 = vpack.c.bf16 %v130, %v130
    %v139 = vpack.c.bf16 %v131, %v131
    %v140 = vpack.c.bf16 %v132, %v132
    %v141 = vpack.c.bf16 %v133, %v133
    %v142 = vpack.c.bf16 %v134, %v134
    %v143 = vpack.c.bf16 %v135, %v135
    %v144 = vld [vmem:[#allocation11] sm:$0xff]
    %v145 = vld [vmem:[#allocation11 + $0x8] sm:$0xff]
    %v146 = vld [vmem:[#allocation11 + $0x10] sm:$0xff]
    %v147 = vld [vmem:[#allocation11 + $0x18] sm:$0xff]
    %v148 = vld [vmem:[#allocation11 + $0x20] sm:$0xff]
    %v149 = vld [vmem:[#allocation11 + $0x28] sm:$0xff]
    %v150 = vld [vmem:[#allocation11 + $0x30] sm:$0xff]
    %v151 = vld [vmem:[#allocation11 + $0x38] sm:$0xff]
    %v152 = vpack.c.bf16 %v144, %v144
    %v153 = vpack.c.bf16 %v145, %v145
    %v154 = vpack.c.bf16 %v146, %v146
    %v155 = vpack.c.bf16 %v147, %v147
    %v156 = vpack.c.bf16 %v148, %v148
    %v157 = vpack.c.bf16 %v149, %v149
    %v158 = vpack.c.bf16 %v150, %v150
    %v159 = vpack.c.bf16 %v151, %v151
    %vm160 = vcmask 261120
    %v162 = vsel %vm160, %v120, 0
    %v165 = vsel %vm160, %v136, 0
    %167 = vmatprep.subr.bf16.mxu0 0
    %168 = vmatpush1.bf16.xpose.msra.mxu0 %v165
    %169 = vmatprep.subr.bf16.mxu0 0
    %170 = vmatpush1.bf16.xpose.msra.mxu0 0
    %171 = vmatprep.subr.bf16.mxu0 0
    %172 = vmatpush1.bf16.xpose.msra.mxu0 0
    %173 = vmatprep.subr.bf16.mxu0 0
    %174 = vmatpush1.bf16.xpose.msra.mxu0 0
    %175 = vmatprep.subr.bf16.mxu0 0
    %176 = vmatpush1.bf16.xpose.msra.mxu0 0
    %177 = vmatprep.subr.bf16.mxu0 0
    %178 = vmatpush1.bf16.xpose.msra.mxu0 0
    %179 = vmatprep.subr.bf16.mxu0 0
    %180 = vmatpush1.bf16.xpose.msra.mxu0 0
    %181 = vmatprep.subr.bf16.mxu0 0
    %182 = vmatpush1.bf16.xpose.msra.mxu0 0
    %183 = vmatprep.subr.bf16.mxu0 0
    %184 = vmatpush1.bf16.xpose.msra.mxu0 0
    %185 = vmatprep.subr.bf16.mxu0 0
    %186 = vmatpush1.bf16.xpose.msra.mxu0 0
    %187 = vmatprep.subr.bf16.mxu0 0
    %188 = vmatpush1.bf16.xpose.msra.mxu0 0
    %189 = vmatprep.subr.bf16.mxu0 0
    %190 = vmatpush1.bf16.xpose.msra.mxu0 0
    %191 = vmatprep.subr.bf16.mxu0 0
    %192 = vmatpush1.bf16.xpose.msra.mxu0 0
    %193 = vmatprep.subr.bf16.mxu0 0
    %194 = vmatpush1.bf16.xpose.msra.mxu0 0
    %195 = vmatprep.subr.bf16.mxu0 0
    %196 = vmatpush1.bf16.xpose.msra.mxu0 0
    %197 = vmatprep.subr.bf16.mxu0 0
    %198 = vmatpush1.bf16.xpose.msra.mxu0 0
    %199 = vmatprep.mubr.bf16.mxu0 0
    %200 = vmatmul.mubr.bf16.gmra.mrb[0].mxu0 %v162
    %v201 = vpop.f32.mrb[0].mxu0
    %v202 = vadd.f32 0.0, %v201
    %v203 = vpop.f32.mrb[0].mxu0
    %v204 = vpop.f32.mrb[0].mxu0
    %v205 = vpop.f32.mrb[0].mxu0
    %206 = vdwg.mxu0
    %v208 = vsel %vm160, %v121, 0
    %v211 = vsel %vm160, %v137, 0
    %213 = vmatprep.subr.bf16.mxu0 0
    %214 = vmatpush1.bf16.xpose.msra.mxu0 %v211
    %215 = vmatprep.subr.bf16.mxu0 0
    %216 = vmatpush1.bf16.xpose.msra.mxu0 0
    %217 = vmatprep.subr.bf16.mxu0 0
    %218 = vmatpush1.bf16.xpose.msra.mxu0 0
    %219 = vmatprep.subr.bf16.mxu0 0
    %220 = vmatpush1.bf16.xpose.msra.mxu0 0
    %221 = vmatprep.subr.bf16.mxu0 0
    %222 = vmatpush1.bf16.xpose.msra.mxu0 0
    %223 = vmatprep.subr.bf16.mxu0 0
    %224 = vmatpush1.bf16.xpose.msra.mxu0 0
    %225 = vmatprep.subr.bf16.mxu0 0
    %226 = vmatpush1.bf16.xpose.msra.mxu0 0
    %227 = vmatprep.subr.bf16.mxu0 0
    %228 = vmatpush1.bf16.xpose.msra.mxu0 0
    %229 = vmatprep.subr.bf16.mxu0 0
    %230 = vmatpush1.bf16.xpose.msra.mxu0 0
    %231 = vmatprep.subr.bf16.mxu0 0
    %232 = vmatpush1.bf16.xpose.msra.mxu0 0
    %233 = vmatprep.subr.bf16.mxu0 0
    %234 = vmatpush1.bf16.xpose.msra.mxu0 0
    %235 = vmatprep.subr.bf16.mxu0 0
    %236 = vmatpush1.bf16.xpose.msra.mxu0 0
    %237 = vmatprep.subr.bf16.mxu0 0
    %238 = vmatpush1.bf16.xpose.msra.mxu0 0
    %239 = vmatprep.subr.bf16.mxu0 0
    %240 = vmatpush1.bf16.xpose.msra.mxu0 0
    %241 = vmatprep.subr.bf16.mxu0 0
    %242 = vmatpush1.bf16.xpose.msra.mxu0 0
    %243 = vmatprep.subr.bf16.mxu0 0
    %244 = vmatpush1.bf16.xpose.msra.mxu0 0
    %245 = vmatprep.mubr.bf16.mxu0 0
    %246 = vmatmul.mubr.bf16.gmra.mrb[0].mxu0 %v208
    %v247 = vpop.f32.mrb[0].mxu0
    %v248 = vadd.f32 0.0, %v247
    %v249 = vpop.f32.mrb[0].mxu0
    %v250 = vpop.f32.mrb[0].mxu0
    %v251 = vpop.f32.mrb[0].mxu0
    %252 = vdwg.mxu0
    %v254 = vsel %vm160, %v122, 0
    %v257 = vsel %vm160, %v138, 0
    %259 = vmatprep.subr.bf16.mxu0 0
    %260 = vmatpush1.bf16.xpose.msra.mxu0 %v257
    %261 = vmatprep.subr.bf16.mxu0 0
    %262 = vmatpush1.bf16.xpose.msra.mxu0 0
    %263 = vmatprep.subr.bf16.mxu0 0
    %264 = vmatpush1.bf16.xpose.msra.mxu0 0
    %265 = vmatprep.subr.bf16.mxu0 0
    %266 = vmatpush1.bf16.xpose.msra.mxu0 0
    %267 = vmatprep.subr.bf16.mxu0 0
    %268 = vmatpush1.bf16.xpose.msra.mxu0 0
    %269 = vmatprep.subr.bf16.mxu0 0
    %270 = vmatpush1.bf16.xpose.msra.mxu0 0
    %271 = vmatprep.subr.bf16.mxu0 0
    %272 = vmatpush1.bf16.xpose.msra.mxu0 0
    %273 = vmatprep.subr.bf16.mxu0 0
    %274 = vmatpush1.bf16.xpose.msra.mxu0 0
    %275 = vmatprep.subr.bf16.mxu0 0
    %276 = vmatpush1.bf16.xpose.msra.mxu0 0
    %277 = vmatprep.subr.bf16.mxu0 0
    %278 = vmatpush1.bf16.xpose.msra.mxu0 0
    %279 = vmatprep.subr.bf16.mxu0 0
    %280 = vmatpush1.bf16.xpose.msra.mxu0 0
    %281 = vmatprep.subr.bf16.mxu0 0
    %282 = vmatpush1.bf16.xpose.msra.mxu0 0
    %283 = vmatprep.subr.bf16.mxu0 0
    %284 = vmatpush1.bf16.xpose.msra.mxu0 0
    %285 = vmatprep.subr.bf16.mxu0 0
    %286 = vmatpush1.bf16.xpose.msra.mxu0 0
    %287 = vmatprep.subr.bf16.mxu0 0
    %288 = vmatpush1.bf16.xpose.msra.mxu0 0
    %289 = vmatprep.subr.bf16.mxu0 0
    %290 = vmatpush1.bf16.xpose.msra.mxu0 0
    %291 = vmatprep.mubr.bf16.mxu0 0
    %292 = vmatmul.mubr.bf16.gmra.mrb[0].mxu0 %v254
    %v293 = vpop.f32.mrb[0].mxu0
    %v294 = vadd.f32 0.0, %v293
    %v295 = vpop.f32.mrb[0].mxu0
    %v296 = vpop.f32.mrb[0].mxu0
    %v297 = vpop.f32.mrb[0].mxu0
    %298 = vdwg.mxu0
    %v300 = vsel %vm160, %v123, 0
    %v303 = vsel %vm160, %v139, 0
    %305 = vmatprep.subr.bf16.mxu0 0
    %306 = vmatpush1.bf16.xpose.msra.mxu0 %v303
    %307 = vmatprep.subr.bf16.mxu0 0
    %308 = vmatpush1.bf16.xpose.msra.mxu0 0
    %309 = vmatprep.subr.bf16.mxu0 0
    %310 = vmatpush1.bf16.xpose.msra.mxu0 0
    %311 = vmatprep.subr.bf16.mxu0 0
    %312 = vmatpush1.bf16.xpose.msra.mxu0 0
    %313 = vmatprep.subr.bf16.mxu0 0
    %314 = vmatpush1.bf16.xpose.msra.mxu0 0
    %315 = vmatprep.subr.bf16.mxu0 0
    %316 = vmatpush1.bf16.xpose.msra.mxu0 0
    %317 = vmatprep.subr.bf16.mxu0 0
    %318 = vmatpush1.bf16.xpose.msra.mxu0 0
    %319 = vmatprep.subr.bf16.mxu0 0
    %320 = vmatpush1.bf16.xpose.msra.mxu0 0
    %321 = vmatprep.subr.bf16.mxu0 0
    %322 = vmatpush1.bf16.xpose.msra.mxu0 0
    %323 = vmatprep.subr.bf16.mxu0 0
    %324 = vmatpush1.bf16.xpose.msra.mxu0 0
    %325 = vmatprep.subr.bf16.mxu0 0
    %326 = vmatpush1.bf16.xpose.msra.mxu0 0
    %327 = vmatprep.subr.bf16.mxu0 0
    %328 = vmatpush1.bf16.xpose.msra.mxu0 0
    %329 = vmatprep.subr.bf16.mxu0 0
    %330 = vmatpush1.bf16.xpose.msra.mxu0 0
    %331 = vmatprep.subr.bf16.mxu0 0
    %332 = vmatpush1.bf16.xpose.msra.mxu0 0
    %333 = vmatprep.subr.bf16.mxu0 0
    %334 = vmatpush1.bf16.xpose.msra.mxu0 0
    %335 = vmatprep.subr.bf16.mxu0 0
    %336 = vmatpush1.bf16.xpose.msra.mxu0 0
    %337 = vmatprep.mubr.bf16.mxu0 0
    %338 = vmatmul.mubr.bf16.gmra.mrb[0].mxu0 %v300
    %v339 = vpop.f32.mrb[0].mxu0
    %v340 = vadd.f32 0.0, %v339
    %v341 = vpop.f32.mrb[0].mxu0
    %v342 = vpop.f32.mrb[0].mxu0
    %v343 = vpop.f32.mrb[0].mxu0
    %344 = vdwg.mxu0
    %v346 = vsel %vm160, %v124, 0
    %v349 = vsel %vm160, %v140, 0
    %351 = vmatprep.subr.bf16.mxu0 0
    %352 = vmatpush1.bf16.xpose.msra.mxu0 %v349
    %353 = vmatprep.subr.bf16.mxu0 0
    %354 = vmatpush1.bf16.xpose.msra.mxu0 0
    %355 = vmatprep.subr.bf16.mxu0 0
    %356 = vmatpush1.bf16.xpose.msra.mxu0 0
    %357 = vmatprep.subr.bf16.mxu0 0
    %358 = vmatpush1.bf16.xpose.msra.mxu0 0
    %359 = vmatprep.subr.bf16.mxu0 0
    %360 = vmatpush1.bf16.xpose.msra.mxu0 0
    %361 = vmatprep.subr.bf16.mxu0 0
    %362 = vmatpush1.bf16.xpose.msra.mxu0 0
    %363 = vmatprep.subr.bf16.mxu0 0
    %364 = vmatpush1.bf16.xpose.msra.mxu0 0
    %365 = vmatprep.subr.bf16.mxu0 0
    %366 = vmatpush1.bf16.xpose.msra.mxu0 0
    %367 = vmatprep.subr.bf16.mxu0 0
    %368 = vmatpush1.bf16.xpose.msra.mxu0 0
    %369 = vmatprep.subr.bf16.mxu0 0
    %370 = vmatpush1.bf16.xpose.msra.mxu0 0
    %371 = vmatprep.subr.bf16.mxu0 0
    %372 = vmatpush1.bf16.xpose.msra.mxu0 0
    %373 = vmatprep.subr.bf16.mxu0 0
    %374 = vmatpush1.bf16.xpose.msra.mxu0 0
    %375 = vmatprep.subr.bf16.mxu0 0
    %376 = vmatpush1.bf16.xpose.msra.mxu0 0
    %377 = vmatprep.subr.bf16.mxu0 0
    %378 = vmatpush1.bf16.xpose.msra.mxu0 0
    %379 = vmatprep.subr.bf16.mxu0 0
    %380 = vmatpush1.bf16.xpose.msra.mxu0 0
    %381 = vmatprep.subr.bf16.mxu0 0
    %382 = vmatpush1.bf16.xpose.msra.mxu0 0
    %383 = vmatprep.mubr.bf16.mxu0 0
    %384 = vmatmul.mubr.bf16.gmra.mrb[0].mxu0 %v346
    %v385 = vpop.f32.mrb[0].mxu0
    %v386 = vadd.f32 0.0, %v385
    %v387 = vpop.f32.mrb[0].mxu0
    %v388 = vpop.f32.mrb[0].mxu0
    %v389 = vpop.f32.mrb[0].mxu0
    %390 = vdwg.mxu0
    %v392 = vsel %vm160, %v125, 0
    %v395 = vsel %vm160, %v141, 0
    %397 = vmatprep.subr.bf16.mxu0 0
    %398 = vmatpush1.bf16.xpose.msra.mxu0 %v395
    %399 = vmatprep.subr.bf16.mxu0 0
    %400 = vmatpush1.bf16.xpose.msra.mxu0 0
    %401 = vmatprep.subr.bf16.mxu0 0
    %402 = vmatpush1.bf16.xpose.msra.mxu0 0
    %403 = vmatprep.subr.bf16.mxu0 0
    %404 = vmatpush1.bf16.xpose.msra.mxu0 0
    %405 = vmatprep.subr.bf16.mxu0 0
    %406 = vmatpush1.bf16.xpose.msra.mxu0 0
    %407 = vmatprep.subr.bf16.mxu0 0
    %408 = vmatpush1.bf16.xpose.msra.mxu0 0
    %409 = vmatprep.subr.bf16.mxu0 0
    %410 = vmatpush1.bf16.xpose.msra.mxu0 0
    %411 = vmatprep.subr.bf16.mxu0 0
    %412 = vmatpush1.bf16.xpose.msra.mxu0 0
    %413 = vmatprep.subr.bf16.mxu0 0
    %414 = vmatpush1.bf16.xpose.msra.mxu0 0
    %415 = vmatprep.subr.bf16.mxu0 0
    %416 = vmatpush1.bf16.xpose.msra.mxu0 0
    %417 = vmatprep.subr.bf16.mxu0 0
    %418 = vmatpush1.bf16.xpose.msra.mxu0 0
    %419 = vmatprep.subr.bf16.mxu0 0
    %420 = vmatpush1.bf16.xpose.msra.mxu0 0
    %421 = vmatprep.subr.bf16.mxu0 0
    %422 = vmatpush1.bf16.xpose.msra.mxu0 0
    %423 = vmatprep.subr.bf16.mxu0 0
    %424 = vmatpush1.bf16.xpose.msra.mxu0 0
    %425 = vmatprep.subr.bf16.mxu0 0
    %426 = vmatpush1.bf16.xpose.msra.mxu0 0
    %427 = vmatprep.subr.bf16.mxu0 0
    %428 = vmatpush1.bf16.xpose.msra.mxu0 0
    %429 = vmatprep.mubr.bf16.mxu0 0
    %430 = vmatmul.mubr.bf16.gmra.mrb[0].mxu0 %v392
    %v431 = vpop.f32.mrb[0].mxu0
    %v432 = vadd.f32 0.0, %v431
    %v433 = vpop.f32.mrb[0].mxu0
    %v434 = vpop.f32.mrb[0].mxu0
    %v435 = vpop.f32.mrb[0].mxu0
    %436 = vdwg.mxu0
    %v438 = vsel %vm160, %v126, 0
    %v441 = vsel %vm160, %v142, 0
    %443 = vmatprep.subr.bf16.mxu0 0
    %444 = vmatpush1.bf16.xpose.msra.mxu0 %v441
    %445 = vmatprep.subr.bf16.mxu0 0
    %446 = vmatpush1.bf16.xpose.msra.mxu0 0
    %447 = vmatprep.subr.bf16.mxu0 0
    %448 = vmatpush1.bf16.xpose.msra.mxu0 0
    %449 = vmatprep.subr.bf16.mxu0 0
    %450 = vmatpush1.bf16.xpose.msra.mxu0 0
    %451 = vmatprep.subr.bf16.mxu0 0
    %452 = vmatpush1.bf16.xpose.msra.mxu0 0
    %453 = vmatprep.subr.bf16.mxu0 0
    %454 = vmatpush1.bf16.xpose.msra.mxu0 0
    %455 = vmatprep.subr.bf16.mxu0 0
    %456 = vmatpush1.bf16.xpose.msra.mxu0 0
    %457 = vmatprep.subr.bf16.mxu0 0
    %458 = vmatpush1.bf16.xpose.msra.mxu0 0
    %459 = vmatprep.subr.bf16.mxu0 0
    %460 = vmatpush1.bf16.xpose.msra.mxu0 0
    %461 = vmatprep.subr.bf16.mxu0 0
    %462 = vmatpush1.bf16.xpose.msra.mxu0 0
    %463 = vmatprep.subr.bf16.mxu0 0
    %464 = vmatpush1.bf16.xpose.msra.mxu0 0
    %465 = vmatprep.subr.bf16.mxu0 0
    %466 = vmatpush1.bf16.xpose.msra.mxu0 0
    %467 = vmatprep.subr.bf16.mxu0 0
    %468 = vmatpush1.bf16.xpose.msra.mxu0 0
    %469 = vmatprep.subr.bf16.mxu0 0
    %470 = vmatpush1.bf16.xpose.msra.mxu0 0
    %471 = vmatprep.subr.bf16.mxu0 0
    %472 = vmatpush1.bf16.xpose.msra.mxu0 0
    %473 = vmatprep.subr.bf16.mxu0 0
    %474 = vmatpush1.bf16.xpose.msra.mxu0 0
    %475 = vmatprep.mubr.bf16.mxu0 0
    %476 = vmatmul.mubr.bf16.gmra.mrb[0].mxu0 %v438
    %v477 = vpop.f32.mrb[0].mxu0
    %v478 = vadd.f32 0.0, %v477
    %v479 = vpop.f32.mrb[0].mxu0
    %v480 = vpop.f32.mrb[0].mxu0
    %v481 = vpop.f32.mrb[0].mxu0
    %482 = vdwg.mxu0
    %v484 = vsel %vm160, %v127, 0
    %v487 = vsel %vm160, %v143, 0
    %489 = vmatprep.subr.bf16.mxu0 0
    %490 = vmatpush1.bf16.xpose.msra.mxu0 %v487
    %491 = vmatprep.subr.bf16.mxu0 0
    %492 = vmatpush1.bf16.xpose.msra.mxu0 0
    %493 = vmatprep.subr.bf16.mxu0 0
    %494 = vmatpush1.bf16.xpose.msra.mxu0 0
    %495 = vmatprep.subr.bf16.mxu0 0
    %496 = vmatpush1.bf16.xpose.msra.mxu0 0
    %497 = vmatprep.subr.bf16.mxu0 0
    %498 = vmatpush1.bf16.xpose.msra.mxu0 0
    %499 = vmatprep.subr.bf16.mxu0 0
    %500 = vmatpush1.bf16.xpose.msra.mxu0 0
    %501 = vmatprep.subr.bf16.mxu0 0
    %502 = vmatpush1.bf16.xpose.msra.mxu0 0
    %503 = vmatprep.subr.bf16.mxu0 0
    %504 = vmatpush1.bf16.xpose.msra.mxu0 0
    %505 = vmatprep.subr.bf16.mxu0 0
    %506 = vmatpush1.bf16.xpose.msra.mxu0 0
    %507 = vmatprep.subr.bf16.mxu0 0
    %508 = vmatpush1.bf16.xpose.msra.mxu0 0
    %509 = vmatprep.subr.bf16.mxu0 0
    %510 = vmatpush1.bf16.xpose.msra.mxu0 0
    %511 = vmatprep.subr.bf16.mxu0 0
    %512 = vmatpush1.bf16.xpose.msra.mxu0 0
    %513 = vmatprep.subr.bf16.mxu0 0
    %514 = vmatpush1.bf16.xpose.msra.mxu0 0
    %515 = vmatprep.subr.bf16.mxu0 0
    %516 = vmatpush1.bf16.xpose.msra.mxu0 0
    %517 = vmatprep.subr.bf16.mxu0 0
    %518 = vmatpush1.bf16.xpose.msra.mxu0 0
    %519 = vmatprep.subr.bf16.mxu0 0
    %520 = vmatpush1.bf16.xpose.msra.mxu0 0
    %521 = vmatprep.mubr.bf16.mxu0 0
    %522 = vmatmul.mubr.bf16.gmra.mrb[0].mxu0 %v484
    %v523 = vpop.f32.mrb[0].mxu0
    %v524 = vadd.f32 0.0, %v523
    %v525 = vpop.f32.mrb[0].mxu0
    %v526 = vpop.f32.mrb[0].mxu0
    %v527 = vpop.f32.mrb[0].mxu0
    %528 = vdwg.mxu0
    %v529 = vld [vmem:[#allocation3] sm:$0xff]
    %v530 = vld [vmem:[#allocation3 + $0x8] sm:$0xff]
    %v531 = vld [vmem:[#allocation3 + $0x10] sm:$0xff]
    %v532 = vld [vmem:[#allocation3 + $0x18] sm:$0xff]
    %v533 = vld [vmem:[#allocation3 + $0x20] sm:$0xff]
    %v534 = vld [vmem:[#allocation3 + $0x28] sm:$0xff]
    %v535 = vld [vmem:[#allocation3 + $0x30] sm:$0xff]
    %v536 = vld [vmem:[#allocation3 + $0x38] sm:$0xff]
    %vm537 = vcmask 64512
    %v538 = vsel %vm537, %v202, -inf
    %539 = vmax.xlane.f32.xlu0 %v538
    %v540 = vpop.xlane.xlu0 %539
    %v541 = vsel %vm537, %v248, -inf
    %542 = vmax.xlane.f32.xlu0 %v541
    %v543 = vpop.xlane.xlu0 %542
    %v544 = vsel %vm537, %v294, -inf
    %545 = vmax.xlane.f32.xlu0 %v544
    %v546 = vpop.xlane.xlu0 %545
    %v547 = vsel %vm537, %v340, -inf
    %548 = vmax.xlane.f32.xlu0 %v547
    %v549 = vpop.xlane.xlu0 %548
    %v550 = vsel %vm537, %v386, -inf
    %551 = vmax.xlane.f32.xlu0 %v550
    %v552 = vpop.xlane.xlu0 %551
    %v553 = vsel %vm537, %v432, -inf
    %554 = vmax.xlane.f32.xlu0 %v553
    %v555 = vpop.xlane.xlu0 %554
    %v556 = vsel %vm537, %v478, -inf
    %557 = vmax.xlane.f32.xlu0 %v556
    %v558 = vpop.xlane.xlu0 %557
    %v559 = vsel %vm537, %v524, -inf
    %560 = vmax.xlane.f32.xlu0 %v559
    %v561 = vpop.xlane.xlu0 %560
    %v562 = vmax.f32 %v529, %v540
    %v563 = vmax.f32 %v530, %v543
    %v564 = vmax.f32 %v531, %v546
    %v565 = vmax.f32 %v532, %v549
    %v566 = vmax.f32 %v533, %v552
    %v567 = vmax.f32 %v534, %v555
    %v568 = vmax.f32 %v535, %v558
    %v569 = vmax.f32 %v536, %v561
    %v570 = vsub.f32 %v529, %v562
    %v571 = vsub.f32 %v530, %v563
    %v572 = vsub.f32 %v531, %v564
    %v573 = vsub.f32 %v532, %v565
    %v574 = vsub.f32 %v533, %v566
    %v575 = vsub.f32 %v534, %v567
    %v576 = vsub.f32 %v535, %v568
    %v577 = vsub.f32 %v536, %v569
    %v578 = vmul.f32 %v570, 1.442695
    %v579 = vpow.pop %v578
    %v580 = vmul.f32 %v571, 1.442695
    %v581 = vpow.pop %v580
    %v582 = vmul.f32 %v572, 1.442695
    %v583 = vpow.pop %v582
    %v584 = vmul.f32 %v573, 1.442695
    %v585 = vpow.pop %v584
    %v586 = vmul.f32 %v574, 1.442695
    %v587 = vpow.pop %v586
    %v588 = vmul.f32 %v575, 1.442695
    %v589 = vpow.pop %v588
    %v590 = vmul.f32 %v576, 1.442695
    %v591 = vpow.pop %v590
    %v592 = vmul.f32 %v577, 1.442695
    %v593 = vpow.pop %v592
    %595 = vset.pattern.permute.xlu0 0
    %596 = vperm.xlu0 %595, %v562
    %v597 = vpop.permute.xlu0 %596
    %600 = vset.pattern.permute.xlu0 0
    %601 = vperm.xlu0 %600, %v563
    %v602 = vpop.permute.xlu0 %601
    %605 = vset.pattern.permute.xlu0 0
    %606 = vperm.xlu0 %605, %v564
    %v607 = vpop.permute.xlu0 %606
    %610 = vset.pattern.permute.xlu0 0
    %611 = vperm.xlu0 %610, %v565
    %v612 = vpop.permute.xlu0 %611
    %615 = vset.pattern.permute.xlu0 0
    %616 = vperm.xlu0 %615, %v566
    %v617 = vpop.permute.xlu0 %616
    %620 = vset.pattern.permute.xlu0 0
    %621 = vperm.xlu0 %620, %v567
    %v622 = vpop.permute.xlu0 %621
    %625 = vset.pattern.permute.xlu0 0
    %626 = vperm.xlu0 %625, %v568
    %v627 = vpop.permute.xlu0 %626
    %630 = vset.pattern.permute.xlu0 0
    %631 = vperm.xlu0 %630, %v569
    %v632 = vpop.permute.xlu0 %631
    %v634 = vsub.f32 %v202, %v597
    %v635 = vsub.f32 %v248, %v602
    %v636 = vsub.f32 %v294, %v607
    %v637 = vsub.f32 %v340, %v612
    %v638 = vsub.f32 %v386, %v617
    %v639 = vsub.f32 %v432, %v622
    %v640 = vsub.f32 %v478, %v627
    %v641 = vsub.f32 %v524, %v632
    %v642 = vpack.c.bf16 %v634, %v634
    %v643 = vpack.c.bf16 %v635, %v635
    %v644 = vpack.c.bf16 %v636, %v636
    %v645 = vpack.c.bf16 %v637, %v637
    %v646 = vpack.c.bf16 %v638, %v638
    %v647 = vpack.c.bf16 %v639, %v639
    %v648 = vpack.c.bf16 %v640, %v640
    %v649 = vpack.c.bf16 %v641, %v641
    %v651 = vmul.bf16 %v642, 1069105081
    %v652 = vpow.bf16.pop %v651
    %v654 = vmul.bf16 %v643, 1069105081
    %v655 = vpow.bf16.pop %v654
    %v657 = vmul.bf16 %v644, 1069105081
    %v658 = vpow.bf16.pop %v657
    %v660 = vmul.bf16 %v645, 1069105081
    %v661 = vpow.bf16.pop %v660
    %v663 = vmul.bf16 %v646, 1069105081
    %v664 = vpow.bf16.pop %v663
    %v666 = vmul.bf16 %v647, 1069105081
    %v667 = vpow.bf16.pop %v666
    %v669 = vmul.bf16 %v648, 1069105081
    %v670 = vpow.bf16.pop %v669
    %v672 = vmul.bf16 %v649, 1069105081
    %v673 = vpow.bf16.pop %v672
    %v674 = vld [vmem:[#allocation4] sm:$0xff]
    %v675 = vld [vmem:[#allocation4 + $0x8] sm:$0xff]
    %v676 = vld [vmem:[#allocation4 + $0x10] sm:$0xff]
    %v677 = vld [vmem:[#allocation4 + $0x18] sm:$0xff]
    %v678 = vld [vmem:[#allocation4 + $0x20] sm:$0xff]
    %v679 = vld [vmem:[#allocation4 + $0x28] sm:$0xff]
    %v680 = vld [vmem:[#allocation4 + $0x30] sm:$0xff]
    %v681 = vld [vmem:[#allocation4 + $0x38] sm:$0xff]
    %v682 = vmul.f32 %v579, %v674
    %v683 = vmul.f32 %v581, %v675
    %v684 = vmul.f32 %v583, %v676
    %v685 = vmul.f32 %v585, %v677
    %v686 = vmul.f32 %v587, %v678
    %v687 = vmul.f32 %v589, %v679
    %v688 = vmul.f32 %v591, %v680
    %v689 = vmul.f32 %v593, %v681
    %v690 = vunpack.c.l.bf16 %v652
    %v691 = vunpack.c.l.bf16 %v655
    %v692 = vunpack.c.l.bf16 %v658
    %v693 = vunpack.c.l.bf16 %v661
    %v694 = vunpack.c.l.bf16 %v664
    %v695 = vunpack.c.l.bf16 %v667
    %v696 = vunpack.c.l.bf16 %v670
    %v697 = vunpack.c.l.bf16 %v673
    %v698 = vsel %vm537, %v690, 0.0
    %699 = vadd.xlane.f32.xlu0 %v698
    %v700 = vpop.xlane.xlu0 %699
    %v701 = vsel %vm537, %v691, 0.0
    %702 = vadd.xlane.f32.xlu0 %v701
    %v703 = vpop.xlane.xlu0 %702
    %v704 = vsel %vm537, %v692, 0.0
    %705 = vadd.xlane.f32.xlu0 %v704
    %v706 = vpop.xlane.xlu0 %705
    %v707 = vsel %vm537, %v693, 0.0
    %708 = vadd.xlane.f32.xlu0 %v707
    %v709 = vpop.xlane.xlu0 %708
    %v710 = vsel %vm537, %v694, 0.0
    %711 = vadd.xlane.f32.xlu0 %v710
    %v712 = vpop.xlane.xlu0 %711
    %v713 = vsel %vm537, %v695, 0.0
    %714 = vadd.xlane.f32.xlu0 %v713
    %v715 = vpop.xlane.xlu0 %714
    %v716 = vsel %vm537, %v696, 0.0
    %717 = vadd.xlane.f32.xlu0 %v716
    %v718 = vpop.xlane.xlu0 %717
    %v719 = vsel %vm537, %v697, 0.0
    %720 = vadd.xlane.f32.xlu0 %v719
    %v721 = vpop.xlane.xlu0 %720
    %v722 = vadd.f32 %v682, %v700
    %v723 = vadd.f32 %v683, %v703
    %v724 = vadd.f32 %v684, %v706
    %v725 = vadd.f32 %v685, %v709
    %v726 = vadd.f32 %v686, %v712
    %v727 = vadd.f32 %v687, %v715
    %v728 = vadd.f32 %v688, %v718
    %v729 = vadd.f32 %v689, %v721
    %vm730 = vcmask 7168
    %731 = vst.msk [vmem:[#allocation4] sm:$0xff] %vm730, %v722
    %732 = vst.msk [vmem:[#allocation4 + $0x8] sm:$0xff] %vm730, %v723
    %733 = vst.msk [vmem:[#allocation4 + $0x10] sm:$0xff] %vm730, %v724
    %734 = vst.msk [vmem:[#allocation4 + $0x18] sm:$0xff] %vm730, %v725
    %735 = vst.msk [vmem:[#allocation4 + $0x20] sm:$0xff] %vm730, %v726
    %736 = vst.msk [vmem:[#allocation4 + $0x28] sm:$0xff] %vm730, %v727
    %737 = vst.msk [vmem:[#allocation4 + $0x30] sm:$0xff] %vm730, %v728
    %738 = vst.msk [vmem:[#allocation4 + $0x38] sm:$0xff] %vm730, %v729
    %v739 = vld [vmem:[#allocation5] sm:$0xff]
    %v740 = vld [vmem:[#allocation5 + $0x8] sm:$0xff]
    %v741 = vld [vmem:[#allocation5 + $0x10] sm:$0xff]
    %v742 = vld [vmem:[#allocation5 + $0x18] sm:$0xff]
    %v743 = vld [vmem:[#allocation5 + $0x20] sm:$0xff]
    %v744 = vld [vmem:[#allocation5 + $0x28] sm:$0xff]
    %v745 = vld [vmem:[#allocation5 + $0x30] sm:$0xff]
    %v746 = vld [vmem:[#allocation5 + $0x38] sm:$0xff]
    %748 = vset.pattern.permute.xlu0 0
    %749 = vperm.xlu0 %748, %v579
    %v750 = vpop.permute.xlu0 %749
    %753 = vset.pattern.permute.xlu0 0
    %754 = vperm.xlu0 %753, %v581
    %v755 = vpop.permute.xlu0 %754
    %758 = vset.pattern.permute.xlu0 0
    %759 = vperm.xlu0 %758, %v583
    %v760 = vpop.permute.xlu0 %759
    %763 = vset.pattern.permute.xlu0 0
    %764 = vperm.xlu0 %763, %v585
    %v765 = vpop.permute.xlu0 %764
    %768 = vset.pattern.permute.xlu0 0
    %769 = vperm.xlu0 %768, %v587
    %v770 = vpop.permute.xlu0 %769
    %773 = vset.pattern.permute.xlu0 0
    %774 = vperm.xlu0 %773, %v589
    %v775 = vpop.permute.xlu0 %774
    %778 = vset.pattern.permute.xlu0 0
    %779 = vperm.xlu0 %778, %v591
    %v780 = vpop.permute.xlu0 %779
    %783 = vset.pattern.permute.xlu0 0
    %784 = vperm.xlu0 %783, %v593
    %v785 = vpop.permute.xlu0 %784
    %v787 = vmul.f32 %v750, %v739
    %v788 = vmul.f32 %v755, %v740
    %v789 = vmul.f32 %v760, %v741
    %v790 = vmul.f32 %v765, %v742
    %v791 = vmul.f32 %v770, %v743
    %v792 = vmul.f32 %v775, %v744
    %v793 = vmul.f32 %v780, %v745
    %v794 = vmul.f32 %v785, %v746
    %v796 = vsel %vm537, %v652, 0
    %vm798 = vcmask 1043456
    %v800 = vsel %vm798, %v152, 0
    %802 = vmatprep.subr.bf16.mxu0 0
    %803 = vmatpush1.bf16.msra.mxu0 %v800
    %804 = vmatprep.subr.bf16.mxu0 0
    %805 = vmatpush1.bf16.msra.mxu0 0
    %806 = vmatprep.subr.bf16.mxu0 0
    %807 = vmatpush1.bf16.msra.mxu0 0
    %808 = vmatprep.subr.bf16.mxu0 0
    %809 = vmatpush1.bf16.msra.mxu0 0
    %810 = vmatprep.subr.bf16.mxu0 0
    %811 = vmatpush1.bf16.msra.mxu0 0
    %812 = vmatprep.subr.bf16.mxu0 0
    %813 = vmatpush1.bf16.msra.mxu0 0
    %814 = vmatprep.subr.bf16.mxu0 0
    %815 = vmatpush1.bf16.msra.mxu0 0
    %816 = vmatprep.subr.bf16.mxu0 0
    %817 = vmatpush1.bf16.msra.mxu0 0
    %818 = vmatprep.subr.bf16.mxu0 0
    %819 = vmatpush1.bf16.msra.mxu0 0
    %820 = vmatprep.subr.bf16.mxu0 0
    %821 = vmatpush1.bf16.msra.mxu0 0
    %822 = vmatprep.subr.bf16.mxu0 0
    %823 = vmatpush1.bf16.msra.mxu0 0
    %824 = vmatprep.subr.bf16.mxu0 0
    %825 = vmatpush1.bf16.msra.mxu0 0
    %826 = vmatprep.subr.bf16.mxu0 0
    %827 = vmatpush1.bf16.msra.mxu0 0
    %828 = vmatprep.subr.bf16.mxu0 0
    %829 = vmatpush1.bf16.msra.mxu0 0
    %830 = vmatprep.subr.bf16.mxu0 0
    %831 = vmatpush1.bf16.msra.mxu0 0
    %832 = vmatprep.subr.bf16.mxu0 0
    %833 = vmatpush1.bf16.msra.mxu0 0
    %834 = vmatprep.mubr.bf16.mxu0 0
    %835 = vmatmul.mubr.bf16.gmra.mrb[0].mxu0 %v796
    %v836 = vpop.f32.mrb[0].mxu0
    %v837 = vadd.f32 0.0, %v836
    %v838 = vpop.f32.mrb[0].mxu0
    %v839 = vpop.f32.mrb[0].mxu0
    %v840 = vpop.f32.mrb[0].mxu0
    %841 = vdwg.mxu0
    %v843 = vsel %vm537, %v655, 0
    %v846 = vsel %vm798, %v153, 0
    %848 = vmatprep.subr.bf16.mxu0 0
    %849 = vmatpush1.bf16.msra.mxu0 %v846
    %850 = vmatprep.subr.bf16.mxu0 0
    %851 = vmatpush1.bf16.msra.mxu0 0
    %852 = vmatprep.subr.bf16.mxu0 0
    %853 = vmatpush1.bf16.msra.mxu0 0
    %854 = vmatprep.subr.bf16.mxu0 0
    %855 = vmatpush1.bf16.msra.mxu0 0
    %856 = vmatprep.subr.bf16.mxu0 0
    %857 = vmatpush1.bf16.msra.mxu0 0
    %858 = vmatprep.subr.bf16.mxu0 0
    %859 = vmatpush1.bf16.msra.mxu0 0
    %860 = vmatprep.subr.bf16.mxu0 0
    %861 = vmatpush1.bf16.msra.mxu0 0
    %862 = vmatprep.subr.bf16.mxu0 0
    %863 = vmatpush1.bf16.msra.mxu0 0
    %864 = vmatprep.subr.bf16.mxu0 0
    %865 = vmatpush1.bf16.msra.mxu0 0
    %866 = vmatprep.subr.bf16.mxu0 0
    %867 = vmatpush1.bf16.msra.mxu0 0
    %868 = vmatprep.subr.bf16.mxu0 0
    %869 = vmatpush1.bf16.msra.mxu0 0
    %870 = vmatprep.subr.bf16.mxu0 0
    %871 = vmatpush1.bf16.msra.mxu0 0
    %872 = vmatprep.subr.bf16.mxu0 0
    %873 = vmatpush1.bf16.msra.mxu0 0
    %874 = vmatprep.subr.bf16.mxu0 0
    %875 = vmatpush1.bf16.msra.mxu0 0
    %876 = vmatprep.subr.bf16.mxu0 0
    %877 = vmatpush1.bf16.msra.mxu0 0
    %878 = vmatprep.subr.bf16.mxu0 0
    %879 = vmatpush1.bf16.msra.mxu0 0
    %880 = vmatprep.mubr.bf16.mxu0 0
    %881 = vmatmul.mubr.bf16.gmra.mrb[0].mxu0 %v843
    %v882 = vpop.f32.mrb[0].mxu0
    %v883 = vadd.f32 0.0, %v882
    %v884 = vpop.f32.mrb[0].mxu0
    %v885 = vpop.f32.mrb[0].mxu0
    %v886 = vpop.f32.mrb[0].mxu0
    %887 = vdwg.mxu0
    %v889 = vsel %vm537, %v658, 0
    %v892 = vsel %vm798, %v154, 0
    %894 = vmatprep.subr.bf16.mxu0 0
    %895 = vmatpush1.bf16.msra.mxu0 %v892
    %896 = vmatprep.subr.bf16.mxu0 0
    %897 = vmatpush1.bf16.msra.mxu0 0
    %898 = vmatprep.subr.bf16.mxu0 0
    %899 = vmatpush1.bf16.msra.mxu0 0
    %900 = vmatprep.subr.bf16.mxu0 0
    %901 = vmatpush1.bf16.msra.mxu0 0
    %902 = vmatprep.subr.bf16.mxu0 0
    %903 = vmatpush1.bf16.msra.mxu0 0
    %904 = vmatprep.subr.bf16.mxu0 0
    %905 = vmatpush1.bf16.msra.mxu0 0
    %906 = vmatprep.subr.bf16.mxu0 0
    %907 = vmatpush1.bf16.msra.mxu0 0
    %908 = vmatprep.subr.bf16.mxu0 0
    %909 = vmatpush1.bf16.msra.mxu0 0
    %910 = vmatprep.subr.bf16.mxu0 0
    %911 = vmatpush1.bf16.msra.mxu0 0
    %912 = vmatprep.subr.bf16.mxu0 0
    %913 = vmatpush1.bf16.msra.mxu0 0
    %914 = vmatprep.subr.bf16.mxu0 0
    %915 = vmatpush1.bf16.msra.mxu0 0
    %916 = vmatprep.subr.bf16.mxu0 0
    %917 = vmatpush1.bf16.msra.mxu0 0
    %918 = vmatprep.subr.bf16.mxu0 0
    %919 = vmatpush1.bf16.msra.mxu0 0
    %920 = vmatprep.subr.bf16.mxu0 0
    %921 = vmatpush1.bf16.msra.mxu0 0
    %922 = vmatprep.subr.bf16.mxu0 0
    %923 = vmatpush1.bf16.msra.mxu0 0
    %924 = vmatprep.subr.bf16.mxu0 0
    %925 = vmatpush1.bf16.msra.mxu0 0
    %926 = vmatprep.mubr.bf16.mxu0 0
    %927 = vmatmul.mubr.bf16.gmra.mrb[0].mxu0 %v889
    %v928 = vpop.f32.mrb[0].mxu0
    %v929 = vadd.f32 0.0, %v928
    %v930 = vpop.f32.mrb[0].mxu0
    %v931 = vpop.f32.mrb[0].mxu0
    %v932 = vpop.f32.mrb[0].mxu0
    %933 = vdwg.mxu0
    %v935 = vsel %vm537, %v661, 0
    %v938 = vsel %vm798, %v155, 0
    %940 = vmatprep.subr.bf16.mxu0 0
    %941 = vmatpush1.bf16.msra.mxu0 %v938
    %942 = vmatprep.subr.bf16.mxu0 0
    %943 = vmatpush1.bf16.msra.mxu0 0
    %944 = vmatprep.subr.bf16.mxu0 0
    %945 = vmatpush1.bf16.msra.mxu0 0
    %946 = vmatprep.subr.bf16.mxu0 0
    %947 = vmatpush1.bf16.msra.mxu0 0
    %948 = vmatprep.subr.bf16.mxu0 0
    %949 = vmatpush1.bf16.msra.mxu0 0
    %950 = vmatprep.subr.bf16.mxu0 0
    %951 = vmatpush1.bf16.msra.mxu0 0
    %952 = vmatprep.subr.bf16.mxu0 0
    %953 = vmatpush1.bf16.msra.mxu0 0
    %954 = vmatprep.subr.bf16.mxu0 0
    %955 = vmatpush1.bf16.msra.mxu0 0
    %956 = vmatprep.subr.bf16.mxu0 0
    %957 = vmatpush1.bf16.msra.mxu0 0
    %958 = vmatprep.subr.bf16.mxu0 0
    %959 = vmatpush1.bf16.msra.mxu0 0
    %960 = vmatprep.subr.bf16.mxu0 0
    %961 = vmatpush1.bf16.msra.mxu0 0
    %962 = vmatprep.subr.bf16.mxu0 0
    %963 = vmatpush1.bf16.msra.mxu0 0
    %964 = vmatprep.subr.bf16.mxu0 0
    %965 = vmatpush1.bf16.msra.mxu0 0
    %966 = vmatprep.subr.bf16.mxu0 0
    %967 = vmatpush1.bf16.msra.mxu0 0
    %968 = vmatprep.subr.bf16.mxu0 0
    %969 = vmatpush1.bf16.msra.mxu0 0
    %970 = vmatprep.subr.bf16.mxu0 0
    %971 = vmatpush1.bf16.msra.mxu0 0
    %972 = vmatprep.mubr.bf16.mxu0 0
    %973 = vmatmul.mubr.bf16.gmra.mrb[0].mxu0 %v935
    %v974 = vpop.f32.mrb[0].mxu0
    %v975 = vadd.f32 0.0, %v974
    %v976 = vpop.f32.mrb[0].mxu0
    %v977 = vpop.f32.mrb[0].mxu0
    %v978 = vpop.f32.mrb[0].mxu0
    %979 = vdwg.mxu0
    %v981 = vsel %vm537, %v664, 0
    %v984 = vsel %vm798, %v156, 0
    %986 = vmatprep.subr.bf16.mxu0 0
    %987 = vmatpush1.bf16.msra.mxu0 %v984
    %988 = vmatprep.subr.bf16.mxu0 0
    %989 = vmatpush1.bf16.msra.mxu0 0
    %990 = vmatprep.subr.bf16.mxu0 0
    %991 = vmatpush1.bf16.msra.mxu0 0
    %992 = vmatprep.subr.bf16.mxu0 0
    %993 = vmatpush1.bf16.msra.mxu0 0
    %994 = vmatprep.subr.bf16.mxu0 0
    %995 = vmatpush1.bf16.msra.mxu0 0
    %996 = vmatprep.subr.bf16.mxu0 0
    %997 = vmatpush1.bf16.msra.mxu0 0
    %998 = vmatprep.subr.bf16.mxu0 0
    %999 = vmatpush1.bf16.msra.mxu0 0
    %1000 = vmatprep.subr.bf16.mxu0 0
    %1001 = vmatpush1.bf16.msra.mxu0 0
    %1002 = vmatprep.subr.bf16.mxu0 0
    %1003 = vmatpush1.bf16.msra.mxu0 0
    %1004 = vmatprep.subr.bf16.mxu0 0
    %1005 = vmatpush1.bf16.msra.mxu0 0
    %1006 = vmatprep.subr.bf16.mxu0 0
    %1007 = vmatpush1.bf16.msra.mxu0 0
    %1008 = vmatprep.subr.bf16.mxu0 0
    %1009 = vmatpush1.bf16.msra.mxu0 0
    %1010 = vmatprep.subr.bf16.mxu0 0
    %1011 = vmatpush1.bf16.msra.mxu0 0
    %1012 = vmatprep.subr.bf16.mxu0 0
    %1013 = vmatpush1.bf16.msra.mxu0 0
    %1014 = vmatprep.subr.bf16.mxu0 0
    %1015 = vmatpush1.bf16.msra.mxu0 0
    %1016 = vmatprep.subr.bf16.mxu0 0
    %1017 = vmatpush1.bf16.msra.mxu0 0
    %1018 = vmatprep.mubr.bf16.mxu0 0
    %1019 = vmatmul.mubr.bf16.gmra.mrb[0].mxu0 %v981
    %v1020 = vpop.f32.mrb[0].mxu0
    %v1021 = vadd.f32 0.0, %v1020
    %v1022 = vpop.f32.mrb[0].mxu0
    %v1023 = vpop.f32.mrb[0].mxu0
    %v1024 = vpop.f32.mrb[0].mxu0
    %1025 = vdwg.mxu0
    %v1027 = vsel %vm537, %v667, 0
    %v1030 = vsel %vm798, %v157, 0
    %1032 = vmatprep.subr.bf16.mxu0 0
    %1033 = vmatpush1.bf16.msra.mxu0 %v1030
    %1034 = vmatprep.subr.bf16.mxu0 0
    %1035 = vmatpush1.bf16.msra.mxu0 0
    %1036 = vmatprep.subr.bf16.mxu0 0
    %1037 = vmatpush1.bf16.msra.mxu0 0
    %1038 = vmatprep.subr.bf16.mxu0 0
    %1039 = vmatpush1.bf16.msra.mxu0 0
    %1040 = vmatprep.subr.bf16.mxu0 0
    %1041 = vmatpush1.bf16.msra.mxu0 0
    %1042 = vmatprep.subr.bf16.mxu0 0
    %1043 = vmatpush1.bf16.msra.mxu0 0
    %1044 = vmatprep.subr.bf16.mxu0 0
    %1045 = vmatpush1.bf16.msra.mxu0 0
    %1046 = vmatprep.subr.bf16.mxu0 0
    %1047 = vmatpush1.bf16.msra.mxu0 0
    %1048 = vmatprep.subr.bf16.mxu0 0
    %1049 = vmatpush1.bf16.msra.mxu0 0
    %1050 = vmatprep.subr.bf16.mxu0 0
    %1051 = vmatpush1.bf16.msra.mxu0 0
    %1052 = vmatprep.subr.bf16.mxu0 0
    %1053 = vmatpush1.bf16.msra.mxu0 0
    %1054 = vmatprep.subr.bf16.mxu0 0
    %1055 = vmatpush1.bf16.msra.mxu0 0
    %1056 = vmatprep.subr.bf16.mxu0 0
    %1057 = vmatpush1.bf16.msra.mxu0 0
    %1058 = vmatprep.subr.bf16.mxu0 0
    %1059 = vmatpush1.bf16.msra.mxu0 0
    %1060 = vmatprep.subr.bf16.mxu0 0
    %1061 = vmatpush1.bf16.msra.mxu0 0
    %1062 = vmatprep.subr.bf16.mxu0 0
    %1063 = vmatpush1.bf16.msra.mxu0 0
    %1064 = vmatprep.mubr.bf16.mxu0 0
    %1065 = vmatmul.mubr.bf16.gmra.mrb[0].mxu0 %v1027
    %v1066 = vpop.f32.mrb[0].mxu0
    %v1067 = vadd.f32 0.0, %v1066
    %v1068 = vpop.f32.mrb[0].mxu0
    %v1069 = vpop.f32.mrb[0].mxu0
    %v1070 = vpop.f32.mrb[0].mxu0
    %1071 = vdwg.mxu0
    %v1073 = vsel %vm537, %v670, 0
    %v1076 = vsel %vm798, %v158, 0
    %1078 = vmatprep.subr.bf16.mxu0 0
    %1079 = vmatpush1.bf16.msra.mxu0 %v1076
    %1080 = vmatprep.subr.bf16.mxu0 0
    %1081 = vmatpush1.bf16.msra.mxu0 0
    %1082 = vmatprep.subr.bf16.mxu0 0
    %1083 = vmatpush1.bf16.msra.mxu0 0
    %1084 = vmatprep.subr.bf16.mxu0 0
    %1085 = vmatpush1.bf16.msra.mxu0 0
    %1086 = vmatprep.subr.bf16.mxu0 0
    %1087 = vmatpush1.bf16.msra.mxu0 0
    %1088 = vmatprep.subr.bf16.mxu0 0
    %1089 = vmatpush1.bf16.msra.mxu0 0
    %1090 = vmatprep.subr.bf16.mxu0 0
    %1091 = vmatpush1.bf16.msra.mxu0 0
    %1092 = vmatprep.subr.bf16.mxu0 0
    %1093 = vmatpush1.bf16.msra.mxu0 0
    %1094 = vmatprep.subr.bf16.mxu0 0
    %1095 = vmatpush1.bf16.msra.mxu0 0
    %1096 = vmatprep.subr.bf16.mxu0 0
    %1097 = vmatpush1.bf16.msra.mxu0 0
    %1098 = vmatprep.subr.bf16.mxu0 0
    %1099 = vmatpush1.bf16.msra.mxu0 0
    %1100 = vmatprep.subr.bf16.mxu0 0
    %1101 = vmatpush1.bf16.msra.mxu0 0
    %1102 = vmatprep.subr.bf16.mxu0 0
    %1103 = vmatpush1.bf16.msra.mxu0 0
    %1104 = vmatprep.subr.bf16.mxu0 0
    %1105 = vmatpush1.bf16.msra.mxu0 0
    %1106 = vmatprep.subr.bf16.mxu0 0
    %1107 = vmatpush1.bf16.msra.mxu0 0
    %1108 = vmatprep.subr.bf16.mxu0 0
    %1109 = vmatpush1.bf16.msra.mxu0 0
    %1110 = vmatprep.mubr.bf16.mxu0 0
    %1111 = vmatmul.mubr.bf16.gmra.mrb[0].mxu0 %v1073
    %v1112 = vpop.f32.mrb[0].mxu0
    %v1113 = vadd.f32 0.0, %v1112
    %v1114 = vpop.f32.mrb[0].mxu0
    %v1115 = vpop.f32.mrb[0].mxu0
    %v1116 = vpop.f32.mrb[0].mxu0
    %1117 = vdwg.mxu0
    %v1119 = vsel %vm537, %v673, 0
    %v1122 = vsel %vm798, %v159, 0
    %1124 = vmatprep.subr.bf16.mxu0 0
    %1125 = vmatpush1.bf16.msra.mxu0 %v1122
    %1126 = vmatprep.subr.bf16.mxu0 0
    %1127 = vmatpush1.bf16.msra.mxu0 0
    %1128 = vmatprep.subr.bf16.mxu0 0
    %1129 = vmatpush1.bf16.msra.mxu0 0
    %1130 = vmatprep.subr.bf16.mxu0 0
    %1131 = vmatpush1.bf16.msra.mxu0 0
    %1132 = vmatprep.subr.bf16.mxu0 0
    %1133 = vmatpush1.bf16.msra.mxu0 0
    %1134 = vmatprep.subr.bf16.mxu0 0
    %1135 = vmatpush1.bf16.msra.mxu0 0
    %1136 = vmatprep.subr.bf16.mxu0 0
    %1137 = vmatpush1.bf16.msra.mxu0 0
    %1138 = vmatprep.subr.bf16.mxu0 0
    %1139 = vmatpush1.bf16.msra.mxu0 0
    %1140 = vmatprep.subr.bf16.mxu0 0
    %1141 = vmatpush1.bf16.msra.mxu0 0
    %1142 = vmatprep.subr.bf16.mxu0 0
    %1143 = vmatpush1.bf16.msra.mxu0 0
    %1144 = vmatprep.subr.bf16.mxu0 0
    %1145 = vmatpush1.bf16.msra.mxu0 0
    %1146 = vmatprep.subr.bf16.mxu0 0
    %1147 = vmatpush1.bf16.msra.mxu0 0
    %1148 = vmatprep.subr.bf16.mxu0 0
    %1149 = vmatpush1.bf16.msra.mxu0 0
    %1150 = vmatprep.subr.bf16.mxu0 0
    %1151 = vmatpush1.bf16.msra.mxu0 0
    %1152 = vmatprep.subr.bf16.mxu0 0
    %1153 = vmatpush1.bf16.msra.mxu0 0
    %1154 = vmatprep.subr.bf16.mxu0 0
    %1155 = vmatpush1.bf16.msra.mxu0 0
    %1156 = vmatprep.mubr.bf16.mxu0 0
    %1157 = vmatmul.mubr.bf16.gmra.mrb[0].mxu0 %v1119
    %v1158 = vpop.f32.mrb[0].mxu0
    %v1159 = vadd.f32 0.0, %v1158
    %v1160 = vpop.f32.mrb[0].mxu0
    %v1161 = vpop.f32.mrb[0].mxu0
    %v1162 = vpop.f32.mrb[0].mxu0
    %1163 = vdwg.mxu0
    %v1164 = vadd.f32 %v787, %v837
    %v1165 = vadd.f32 %v788, %v883
    %v1166 = vadd.f32 %v789, %v929
    %v1167 = vadd.f32 %v790, %v975
    %v1168 = vadd.f32 %v791, %v1021
    %v1169 = vadd.f32 %v792, %v1067
    %v1170 = vadd.f32 %v793, %v1113
    %v1171 = vadd.f32 %v794, %v1159
    %1172 = vst.msk [vmem:[#allocation5] sm:$0xff] %vm160, %v1164
    %1173 = vst.msk [vmem:[#allocation5 + $0x8] sm:$0xff] %vm160, %v1165
    %1174 = vst.msk [vmem:[#allocation5 + $0x10] sm:$0xff] %vm160, %v1166
    %1175 = vst.msk [vmem:[#allocation5 + $0x18] sm:$0xff] %vm160, %v1167
    %1176 = vst.msk [vmem:[#allocation5 + $0x20] sm:$0xff] %vm160, %v1168
    %1177 = vst.msk [vmem:[#allocation5 + $0x28] sm:$0xff] %vm160, %v1169
    %1178 = vst.msk [vmem:[#allocation5 + $0x30] sm:$0xff] %vm160, %v1170
    %1179 = vst.msk [vmem:[#allocation5 + $0x38] sm:$0xff] %vm160, %v1171
    %1180 = vst.msk [vmem:[#allocation3] sm:$0xff] %vm730, %v562
    %1181 = vst.msk [vmem:[#allocation3 + $0x8] sm:$0xff] %vm730, %v563
    %1182 = vst.msk [vmem:[#allocation3 + $0x10] sm:$0xff] %vm730, %v564
    %1183 = vst.msk [vmem:[#allocation3 + $0x18] sm:$0xff] %vm730, %v565
    %1184 = vst.msk [vmem:[#allocation3 + $0x20] sm:$0xff] %vm730, %v566
    %1185 = vst.msk [vmem:[#allocation3 + $0x28] sm:$0xff] %vm730, %v567
    %1186 = vst.msk [vmem:[#allocation3 + $0x30] sm:$0xff] %vm730, %v568
    %1187 = vst.msk [vmem:[#allocation3 + $0x38] sm:$0xff] %vm730, %v569
    // Predicated region
    $region30: #{tpu_custom_call.1} parent=1 // pred_check
      %p1188 = pneg %p57
    $region31: #{tpu_custom_call.1} parent=1 // pred_check_branch
      %1190 = sbr.rel (%p1188) target = $region33
    $region32: #{tpu_custom_call.1} parent=1 // pred_region
      %v1191 = vld [vmem:[#allocation4] sm:$0xff]
      %v1192 = vld [vmem:[#allocation4 + $0x8] sm:$0xff]
      %v1193 = vld [vmem:[#allocation4 + $0x10] sm:$0xff]
      %v1194 = vld [vmem:[#allocation4 + $0x18] sm:$0xff]
      %v1195 = vld [vmem:[#allocation4 + $0x20] sm:$0xff]
      %v1196 = vld [vmem:[#allocation4 + $0x28] sm:$0xff]
      %v1197 = vld [vmem:[#allocation4 + $0x30] sm:$0xff]
      %v1198 = vld [vmem:[#allocation4 + $0x38] sm:$0xff]
      %v1199 = vrcp.pop %v1191
      %v1200 = vrcp.pop %v1192
      %v1201 = vrcp.pop %v1193
      %v1202 = vrcp.pop %v1194
      %v1203 = vrcp.pop %v1195
      %v1204 = vrcp.pop %v1196
      %v1205 = vrcp.pop %v1197
      %v1206 = vrcp.pop %v1198
      %v1207 = vld [vmem:[#allocation5] sm:$0xff]
      %v1208 = vld [vmem:[#allocation5 + $0x8] sm:$0xff]
      %v1209 = vld [vmem:[#allocation5 + $0x10] sm:$0xff]
      %v1210 = vld [vmem:[#allocation5 + $0x18] sm:$0xff]
      %v1211 = vld [vmem:[#allocation5 + $0x20] sm:$0xff]
      %v1212 = vld [vmem:[#allocation5 + $0x28] sm:$0xff]
      %v1213 = vld [vmem:[#allocation5 + $0x30] sm:$0xff]
      %v1214 = vld [vmem:[#allocation5 + $0x38] sm:$0xff]
      %1216 = vset.pattern.permute.xlu0 0
      %1217 = vperm.xlu0 %1216, %v1199
      %v1218 = vpop.permute.xlu0 %1217
      %1221 = vset.pattern.permute.xlu0 0
      %1222 = vperm.xlu0 %1221, %v1200
      %v1223 = vpop.permute.xlu0 %1222
      %1226 = vset.pattern.permute.xlu0 0
      %1227 = vperm.xlu0 %1226, %v1201
      %v1228 = vpop.permute.xlu0 %1227
      %1231 = vset.pattern.permute.xlu0 0
      %1232 = vperm.xlu0 %1231, %v1202
      %v1233 = vpop.permute.xlu0 %1232
      %1236 = vset.pattern.permute.xlu0 0
      %1237 = vperm.xlu0 %1236, %v1203
      %v1238 = vpop.permute.xlu0 %1237
      %1241 = vset.pattern.permute.xlu0 0
      %1242 = vperm.xlu0 %1241, %v1204
      %v1243 = vpop.permute.xlu0 %1242
      %1246 = vset.pattern.permute.xlu0 0
      %1247 = vperm.xlu0 %1246, %v1205
      %v1248 = vpop.permute.xlu0 %1247
      %1251 = vset.pattern.permute.xlu0 0
      %1252 = vperm.xlu0 %1251, %v1206
      %v1253 = vpop.permute.xlu0 %1252
      %v1255 = vmul.f32 %v1207, %v1218
      %v1256 = vmul.f32 %v1208, %v1223
      %v1257 = vmul.f32 %v1209, %v1228
      %v1258 = vmul.f32 %v1210, %v1233
      %v1259 = vmul.f32 %v1211, %v1238
      %v1260 = vmul.f32 %v1212, %v1243
      %v1261 = vmul.f32 %v1213, %v1248
      %v1262 = vmul.f32 %v1214, %v1253
      %1263 = vst.msk [vmem:[#allocation12] sm:$0xff] %vm160, %v1255
      %1264 = vst.msk [vmem:[#allocation12 + $0x8] sm:$0xff] %vm160, %v1256
      %1265 = vst.msk [vmem:[#allocation12 + $0x10] sm:$0xff] %vm160, %v1257
      %1266 = vst.msk [vmem:[#allocation12 + $0x18] sm:$0xff] %vm160, %v1258
      %1267 = vst.msk [vmem:[#allocation12 + $0x20] sm:$0xff] %vm160, %v1259
      %1268 = vst.msk [vmem:[#allocation12 + $0x28] sm:$0xff] %vm160, %v1260
      %1269 = vst.msk [vmem:[#allocation12 + $0x30] sm:$0xff] %vm160, %v1261
      %1270 = vst.msk [vmem:[#allocation12 + $0x38] sm:$0xff] %vm160, %v1262
    $region33: #{tpu_custom_call.1} parent=1 // pred_fallthru
      _
    // Predicated region
    $region34: #{tpu_custom_call.1} parent=1 // pred_check
      _
    $region35: #{tpu_custom_call.1} parent=1 // pred_check_branch
      %1272 = sbr.rel (0) target = $region37
    $region36: #{tpu_custom_call.1} parent=1 // pred_region
      %s1274 = ssub.s32 1024, 1024
      %1275 = vsyncadd [#allocation8], %s1274
      %s1276 = sshll.u32 [#allocation12], 4
      %s1277 = int_to_ptr.vmem [resolvable:$true] %s1276
      %1282 = dma.vmem_to_hbm [thread:$0]  %s1277, 1024, %s3, [#allocation8], 128, 128, 8
    $region37: #{tpu_custom_call.1} parent=1 // pred_fallthru
      _
    // Predicated region
    $region38: #{tpu_custom_call.1} parent=1 // pred_check
      _
    $region39: #{tpu_custom_call.1} parent=1 // pred_check_branch
      %1284 = sbr.rel (0) target = $region41
    $region40: #{tpu_custom_call.1} parent=1 // pred_region
      %1285 = dma.done [#allocation8], 1024
    $region41: #{tpu_custom_call.1} parent=1 // pred_fallthru
      _
    %1286 = vsyncpa [#allocation7], 1
    %1287 = vsyncpa [#allocation10], 1
    %1288 = vsyncpa [#allocation8], 1

</llo_original>
